<compile_context>
chip_gen: v7x
topology: tpu7x:2x2x1
jax: 0.10.0
libtpu: 0.0.40
codegen_flags: <defaults>
</compile_context>

<pallas_src>
import functools

import jax
import jax.numpy as jnp
import numpy as np
from jax import lax
from jax.experimental import pallas as pl
from jax.experimental.pallas import tpu as pltpu
from jax.scipy.special import digamma, gammaln

_TILE_N = 1024                      # node-axis tile (multiple of 16 for bf16 sublane packing)
_NUM_SPLITS = 2                     # leading "parallel" grid axis -> 2-TC split on v7x
_LOG2PI = float(np.log(2.0 * np.pi))
_VMEM_LIMIT = 32 * 1024 * 1024      # explicit budget; safe on v5e/v6e (128 MiB) and v7x (64 MiB)


# ---------------------------------------------------------------------------
# kernel 1: node lin1 + segment-sum pooling (per-split partial accumulator)
# ---------------------------------------------------------------------------
def _pool_kernel(x_ref, batch_ref, gid_ref, wn_ref, bn_ref, out_ref):
    # out_ref holds this split's partial (G, H+1) sums; resident across the inner axis.
    @pl.when(pl.program_id(1) == 0)
    def _():
        out_ref[...] = jnp.zeros_like(out_ref)

    # node embedding (encoder lin1 stand-in): bf16 operands -> MXU -> f32 accumulate
    h = jnp.dot(x_ref[...], wn_ref[...], preferred_element_type=jnp.float32) + bn_ref[...]
    h = jnp.where(h > 0, h, 0.01 * h)                      # leaky_relu, f32 elementwise

    # one-hot segment assignment; padded nodes carry id -1 -> all-zero column.
    # gid_ref is a resident (G,1) column -> no per-step broadcasted_iota.
    assign = (gid_ref[...] == batch_ref[...]).astype(jnp.bfloat16)     # (G, TILE_N)

    # segment-sum pooling on the MXU; the last column of h is a constant 1.0, so the
    # node counts come out of the same matmul for free.
    out_ref[...] += jnp.dot(assign, h.astype(jnp.bfloat16),
                            preferred_element_type=jnp.float32)        # (G, H+1)


# ---------------------------------------------------------------------------
# kernel 2: FFN + BatchNorm + per-class Gaussian log density -> alpha  (runs once)
# ---------------------------------------------------------------------------
def _head_kernel(z_ref, w1_ref, b1_ref, w2_ref, b2_ref, w3_ref, b3_ref,
                 gamma_ref, beta_ref, iv_ref, a_ref, c_ref, n_ref, alpha_ref):
    z = z_ref[...]                                                      # (G, H)

    # FFN (encoder lin2 folded into layer 1): Linear -> ReLU -> Linear -> ReLU -> Linear
    h1 = jnp.maximum(
        jnp.dot(z, w1_ref[...], preferred_element_type=jnp.float32) + b1_ref[...], 0.0)
    h2 = jnp.maximum(
        jnp.dot(h1, w2_ref[...], preferred_element_type=jnp.float32) + b2_ref[...], 0.0)
    zk = jnp.dot(h2, w3_ref[...], preferred_element_type=jnp.float32) + b3_ref[...]   # (G, L)

    # BatchNorm1d with batch statistics, two-pass (center-then-square) variance, eps = 1e-5
    mean = jnp.mean(zk, axis=0, keepdims=True)
    d = zk - mean
    var = jnp.mean(d * d, axis=0, keepdims=True)
    zk = d * lax.rsqrt(var + 1e-5)
    zk = zk * gamma_ref[...] + beta_ref[...]

    # per-class diagonal-Gaussian log density, matmul form:
    #   log_q = -0.5 * (zk^2 @ inv_var.T) + zk @ (mu*inv_var).T + const      -> (G, 2)
    log_q = (-0.5 * jnp.dot(zk * zk, iv_ref[...], preferred_element_type=jnp.float32)
             + jnp.dot(zk, a_ref[...], preferred_element_type=jnp.float32)
             + c_ref[...])
    log_q = jnp.minimum(log_q, 80.0)    # guard: keeps alpha finite for digamma/gammaln
    alpha_ref[...] = 1.0 + n_ref[...] * jnp.exp(log_q)


# ---------------------------------------------------------------------------
# wrapper
# ---------------------------------------------------------------------------
def fused_forward(params, x, batch, num_graphs):
    num_nodes, nf = x.shape
    hidden = params["w_node"].shape[1]

    # --- pooling kernel: pad the node axis to a multiple of NUM_SPLITS * TILE_N ---
    chunk = _NUM_SPLITS * _TILE_N
    padded = ((num_nodes + chunk - 1) // chunk) * chunk
    tiles_per_split = padded // chunk

    x_p = jnp.pad(x.astype(jnp.float32),
                  ((0, padded - num_nodes), (0, 0))).astype(jnp.bfloat16)
    batch_row = jnp.pad(batch.astype(jnp.int32), (0, padded - num_nodes),
                        constant_values=-1).reshape(1, padded)
    gid_col = jnp.arange(num_graphs, dtype=jnp.int32).reshape(num_graphs, 1)

    # append a ones column to the node embedding (zero weight col + bias 1.0) so the pooling
    # matmul also produces per-graph node counts.
    wn_aug = jnp.concatenate(
        [params["w_node"], jnp.zeros((nf, 1), jnp.float32)], axis=1).astype(jnp.bfloat16)
    bn_aug = jnp.concatenate([params["b_node"], jnp.ones((1, 1), jnp.float32)], axis=1)

    partial = pl.pallas_call(
        _pool_kernel,
        out_shape=jax.ShapeDtypeStruct((_NUM_SPLITS, num_graphs, hidden + 1), jnp.float32),
        grid=(_NUM_SPLITS, tiles_per_split),
        in_specs=[
            pl.BlockSpec((_TILE_N, nf), lambda c, i: (c * tiles_per_split + i, 0)),   # x (bf16)
            pl.BlockSpec((1, _TILE_N), lambda c, i: (0, c * tiles_per_split + i)),    # batch ids
            pl.BlockSpec((num_graphs, 1), lambda c, i: (0, 0)),                       # graph ids
            pl.BlockSpec((nf, hidden + 1), lambda c, i: (0, 0)),                      # Wn (bf16)
            pl.BlockSpec((1, hidden + 1), lambda c, i: (0, 0)),                       # bn
        ],
        out_specs=pl.BlockSpec((None, num_graphs, hidden + 1), lambda c, i: (c, 0, 0)),
        compiler_params=pltpu.CompilerParams(
            dimension_semantics=("parallel", "arbitrary"),
            vmem_limit_bytes=_VMEM_LIMIT),
    )(x_p, batch_row, gid_col, wn_aug, bn_aug)

    # combine per-core partials; segment mean (empty graphs clamp to mean 0)
    pooled = jnp.sum(partial, axis=0)                                   # (G, H+1)
    z = pooled[:, :hidden] / jnp.maximum(pooled[:, hidden:hidden + 1], 1.0)

    # fold encoder output projection (lin2) into FFN layer 1 (no nonlinearity in between)
    w1f = jnp.dot(params["w_enc"], params["w1"])
    b1f = jnp.dot(params["b_enc"], params["w1"]) + params["b1"]

    # precompute diagonal-Gaussian density constants
    inv_var = jnp.exp(-2.0 * params["log_sigma"])                       # (2, L)
    iv_t = inv_var.T                                                    # (L, 2)
    a_t = (params["mu"] * inv_var).T                                    # (L, 2)
    c_row = (-0.5 * jnp.sum(params["mu"] ** 2 * inv_var
                            + 2.0 * params["log_sigma"] + _LOG2PI,
                            axis=1)).reshape(1, 2)                      # (1, 2)

    head_ins = (z, w1f, b1f, params["w2"], params["b2"], params["w3"], params["b3"],
                params["bn_gamma"], params["bn_beta"], iv_t, a_t, c_row, params["N"])

    alpha = pl.pallas_call(
        _head_kernel,
        out_shape=jax.ShapeDtypeStruct((num_graphs, 2), jnp.float32),
        grid=(1,),
        in_specs=[pl.BlockSpec(tuple(a.shape), lambda i, nd=a.ndim: (0,) * nd)
                  for a in head_ins],
        out_specs=pl.BlockSpec((num_graphs, 2), lambda i: (0, 0)),
        compiler_params=pltpu.CompilerParams(
            dimension_semantics=("arbitrary",),
            vmem_limit_bytes=_VMEM_LIMIT),
    )(*head_ins)
    return alpha


# ---------------------------------------------------------------------------
# plain-JAX glue (loss + L1 normalize), all under one jit
# ---------------------------------------------------------------------------
def uce_loss(alpha, targets):
    targets_hot = jax.nn.one_hot(targets, 2, dtype=jnp.float32)
    alpha0 = jnp.sum(alpha, axis=1, keepdims=True)
    term = jnp.sum(targets_hot * (digamma(alpha0) - digamma(alpha)))
    # Dirichlet entropy
    k = alpha.shape[1]
    a0 = alpha0[:, 0]
    log_b = jnp.sum(gammaln(alpha), axis=1) - gammaln(a0)
    ent = log_b + (a0 - k) * digamma(a0) - jnp.sum((alpha - 1.0) * digamma(alpha), axis=1)
    return term - 1e-5 * jnp.sum(ent)


@functools.partial(jax.jit, static_argnums=(6,))
def attentive_fp_post_forward(params, x, edge_index, edge_attr, batch, targets, num_graphs):
    # TODO(synk): edge_index / edge_attr unused — AttentiveFP message passing not reproduced.
    del edge_index, edge_attr
    alpha = fused_forward(params, x, batch, num_graphs)               # Pallas kernels
    preds = alpha / jnp.sum(alpha, axis=-1, keepdims=True)            # L1 normalize (alpha > 0)
    loss = uce_loss(alpha, targets)
    return loss, preds[:, 1]


# ---------------------------------------------------------------------------
# deterministic parameter construction
# ---------------------------------------------------------------------------
def make_params(key, num_atom_feats, hidden, latent):
    ks = jax.random.split(key, 12)
    s = 0.2
    return {
        "w_node": s * jax.random.normal(ks[0], (num_atom_feats, hidden), jnp.float32),
        "b_node": s * jax.random.normal(ks[1], (1, hidden), jnp.float32),
        "w_enc":  s * jax.random.normal(ks[2], (hidden, hidden), jnp.float32),
        "b_enc":  s * jax.random.normal(ks[3], (1, hidden), jnp.float32),
        "w1":     s * jax.random.normal(ks[4], (hidden, hidden), jnp.float32),
        "b1":     s * jax.random.normal(ks[5], (1, hidden), jnp.float32),
        "w2":     s * jax.random.normal(ks[6], (hidden, hidden), jnp.float32),
        "b2":     s * jax.random.normal(ks[7], (1, hidden), jnp.float32),
        "w3":     s * jax.random.normal(ks[8], (hidden, latent), jnp.float32),
        "b3":     s * jax.random.normal(ks[9], (1, latent), jnp.float32),
        "bn_gamma": jnp.ones((1, latent), jnp.float32),
        "bn_beta":  jnp.zeros((1, latent), jnp.float32),
        "mu":        0.5 * jax.random.normal(ks[10], (2, latent), jnp.float32),
        "log_sigma": 0.1 * jax.random.normal(ks[11], (2, latent), jnp.float32),
        "N": jnp.array([[60.0, 40.0]], jnp.float32),   # class counts from __init__ arg N
    }


if __name__ == "__main__":
    key = jax.random.PRNGKey(0)
    num_atom_feats, num_bond_feats = 9, 3
    hidden, latent = 32, 6
    num_graphs, nodes_per_graph = 4, 5
    num_nodes = num_graphs * nodes_per_graph
    num_edges = 24

    kx, ke, kp = jax.random.split(key, 3)
    x = jax.random.normal(kx, (num_nodes, num_atom_feats), jnp.float32)
    edge_index = jax.random.randint(ke, (2, num_edges), 0, num_nodes, jnp.int32)
    edge_attr = jax.random.normal(ke, (num_edges, num_bond_feats), jnp.float32)
    batch = jnp.repeat(jnp.arange(num_graphs, dtype=jnp.int32), nodes_per_graph)
    targets = jnp.array([0, 1, 1, 0], jnp.int32)

    params = make_params(kp, num_atom_feats, hidden, latent)

    loss, preds_pos = attentive_fp_post_forward(
        params, x, edge_index, edge_attr, batch, targets, num_graphs)
    jax.block_until_ready((loss, preds_pos))
    assert loss.shape == () and preds_pos.shape == (num_graphs,)
    assert bool(jnp.all(jnp.isfinite(preds_pos))) and bool(jnp.isfinite(loss))
    print("KERNEL_OK")
</pallas_src>

<mosaic_0001>
module attributes {stable_mosaic.version = 11 : i64} {
  func.func @_pool_kernel(%arg0: i32, %arg1: i32, %arg2: memref<1024x9xbf16, #tpu.memory_space<vmem>>, %arg3: memref<1x1024xi32, #tpu.memory_space<vmem>>, %arg4: memref<4x1xi32, #tpu.memory_space<vmem>>, %arg5: memref<9x33xbf16, #tpu.memory_space<vmem>>, %arg6: memref<1x33xf32, #tpu.memory_space<vmem>>, %arg7: memref<1x4x33xf32, #tpu.memory_space<vmem>>) attributes {dimension_semantics = [#tpu.dimension_semantics<parallel>, #tpu.dimension_semantics<arbitrary>], iteration_bounds = array<i64: 2, 1>, scalar_prefetch = 0 : i64, scratch_operands = 0 : i64, tpu.core_type = #tpu.core_type<tc>, window_params = [{transform_indices = @transform_0, window_bounds = array<i64: 1024, 9>}, {transform_indices = @transform_1, window_bounds = array<i64: 1, 1024>}, {pipeline_mode = #tpu.pipeline_mode<synchronous>, transform_indices = @transform_2, window_bounds = array<i64: 4, 1>}, {pipeline_mode = #tpu.pipeline_mode<synchronous>, transform_indices = @transform_3, window_bounds = array<i64: 9, 33>}, {pipeline_mode = #tpu.pipeline_mode<synchronous>, transform_indices = @transform_4, window_bounds = array<i64: 1, 33>}, {transform_indices = @transform_5, window_bounds = array<i64: 1, 4, 33>}]} {
    %c0_i32 = arith.constant 0 : i32
    %0 = arith.cmpi eq, %arg1, %c0_i32 : i32
    %1 = arith.extui %0 : i1 to i32
    %c0_i32_0 = arith.constant 0 : i32
    %2 = arith.cmpi ne, %1, %c0_i32_0 : i32
    scf.if %2 {
      %cst_19 = arith.constant 0.000000e+00 : f32
      %30 = vector.broadcast %cst_19 : f32 to vector<4x33xf32>
      %c0_20 = arith.constant 0 : index
      %c0_21 = arith.constant 0 : index
      %c0_22 = arith.constant 0 : index
      %31 = vector.load %arg7[%c0_20, %c0_21, %c0_22] : memref<1x4x33xf32, #tpu.memory_space<vmem>>, vector<1x4x33xf32>
      %32 = vector.shape_cast %31 : vector<1x4x33xf32> to vector<4x33xf32>
      %33 = vector.shape_cast %30 : vector<4x33xf32> to vector<1x4x33xf32>
      tpu.vector_store %arg7[%c0_20, %c0_21, %c0_22], %33 {strides = array<i32>} : memref<1x4x33xf32, #tpu.memory_space<vmem>>, vector<1x4x33xf32>,
    } else {
    }
    %c0 = arith.constant 0 : index
    %c0_1 = arith.constant 0 : index
    %3 = vector.load %arg2[%c0, %c0_1] : memref<1024x9xbf16, #tpu.memory_space<vmem>>, vector<1024x9xbf16>
    %c0_2 = arith.constant 0 : index
    %c0_3 = arith.constant 0 : index
    %4 = vector.load %arg5[%c0_2, %c0_3] : memref<9x33xbf16, #tpu.memory_space<vmem>>, vector<9x33xbf16>
    %cst = arith.constant dense<0.000000e+00> : vector<1024x33xf32>
    %5 = tpu.matmul %3, %4, %cst {dimension_numbers = #tpu.dot_dimension_numbers<[1], [0], [0], [1], [0, 0, 1, 1], [], []>} : vector<1024x9xbf16>, vector<9x33xbf16>, vector<1024x33xf32> -> vector<1024x33xf32>
    %c0_4 = arith.constant 0 : index
    %c0_5 = arith.constant 0 : index
    %6 = vector.load %arg6[%c0_4, %c0_5] : memref<1x33xf32, #tpu.memory_space<vmem>>, vector<1x33xf32>
    %7 = vector.broadcast %6 : vector<1x33xf32> to vector<1024x33xf32>
    %8 = arith.addf %5, %7 : vector<1024x33xf32>
    %cst_6 = arith.constant 0.000000e+00 : f32
    %9 = vector.broadcast %cst_6 : f32 to vector<1024x33xf32>
    %10 = arith.cmpf ogt, %8, %9 : vector<1024x33xf32>
    %cst_7 = arith.constant 0.00999999977 : f32
    %11 = vector.broadcast %cst_7 : f32 to vector<1024x33xf32>
    %12 = arith.mulf %11, %8 : vector<1024x33xf32>
    %13 = arith.select %10, %8, %12 : vector<1024x33xi1>, vector<1024x33xf32>
    %c0_8 = arith.constant 0 : index
    %c0_9 = arith.constant 0 : index
    %14 = vector.load %arg4[%c0_8, %c0_9] : memref<4x1xi32, #tpu.memory_space<vmem>>, vector<4x1xi32>
    %c0_10 = arith.constant 0 : index
    %c0_11 = arith.constant 0 : index
    %15 = vector.load %arg3[%c0_10, %c0_11] : memref<1x1024xi32, #tpu.memory_space<vmem>>, vector<1x1024xi32>
    %16 = vector.broadcast %14 : vector<4x1xi32> to vector<4x1024xi32>
    %17 = vector.broadcast %15 : vector<1x1024xi32> to vector<4x1024xi32>
    %18 = arith.cmpi eq, %16, %17 : vector<4x1024xi32>
    %19 = arith.extui %18 : vector<4x1024xi1> to vector<4x1024xi32>
    %20 = arith.sitofp %19 : vector<4x1024xi32> to vector<4x1024xf32>
    %21 = arith.truncf %20 : vector<4x1024xf32> to vector<4x1024xbf16>
    %c0_12 = arith.constant 0 : index
    %c0_13 = arith.constant 0 : index
    %c0_14 = arith.constant 0 : index
    %22 = vector.load %arg7[%c0_12, %c0_13, %c0_14] : memref<1x4x33xf32, #tpu.memory_space<vmem>>, vector<1x4x33xf32>
    %23 = vector.shape_cast %22 : vector<1x4x33xf32> to vector<4x33xf32>
    %24 = arith.truncf %13 : vector<1024x33xf32> to vector<1024x33xbf16>
    %cst_15 = arith.constant dense<0.000000e+00> : vector<4x33xf32>
    %25 = tpu.matmul %21, %24, %cst_15 {dimension_numbers = #tpu.dot_dimension_numbers<[1], [0], [0], [1], [0, 0, 1, 1], [], []>} : vector<4x1024xbf16>, vector<1024x33xbf16>, vector<4x33xf32> -> vector<4x33xf32>
    %26 = arith.addf %23, %25 : vector<4x33xf32>
    %c0_16 = arith.constant 0 : index
    %c0_17 = arith.constant 0 : index
    %c0_18 = arith.constant 0 : index
    %27 = vector.load %arg7[%c0_16, %c0_17, %c0_18] : memref<1x4x33xf32, #tpu.memory_space<vmem>>, vector<1x4x33xf32>
    %28 = vector.shape_cast %27 : vector<1x4x33xf32> to vector<4x33xf32>
    %29 = vector.shape_cast %26 : vector<4x33xf32> to vector<1x4x33xf32>
    tpu.vector_store %arg7[%c0_16, %c0_17, %c0_18], %29 {strides = array<i32>} : memref<1x4x33xf32, #tpu.memory_space<vmem>>, vector<1x4x33xf32>,
    return
  }
  func.func @transform_0(%arg0: i32, %arg1: i32) -> (i32, i32) {
    %c1_i32 = arith.constant 1 : i32
    %0 = arith.muli %arg0, %c1_i32 : i32
    %1 = arith.addi %0, %arg1 : i32
    %c0_i32 = arith.constant 0 : i32
    %c0_i32_0 = arith.constant 0 : i32
    return %1, %c0_i32 : i32, i32
  }
  func.func @transform_1(%arg0: i32, %arg1: i32) -> (i32, i32) {
    %c1_i32 = arith.constant 1 : i32
    %0 = arith.muli %arg0, %c1_i32 : i32
    %1 = arith.addi %0, %arg1 : i32
    %c0_i32 = arith.constant 0 : i32
    %c0_i32_0 = arith.constant 0 : i32
    return %c0_i32, %1 : i32, i32
  }
  func.func @transform_2(%arg0: i32, %arg1: i32) -> (i32, i32) {
    %c0_i32 = arith.constant 0 : i32
    %c0_i32_0 = arith.constant 0 : i32
    %c0_i32_1 = arith.constant 0 : i32
    return %c0_i32, %c0_i32_0 : i32, i32
  }
  func.func @transform_3(%arg0: i32, %arg1: i32) -> (i32, i32) {
    %c0_i32 = arith.constant 0 : i32
    %c0_i32_0 = arith.constant 0 : i32
    %c0_i32_1 = arith.constant 0 : i32
    return %c0_i32, %c0_i32_0 : i32, i32
  }
  func.func @transform_4(%arg0: i32, %arg1: i32) -> (i32, i32) {
    %c0_i32 = arith.constant 0 : i32
    %c0_i32_0 = arith.constant 0 : i32
    %c0_i32_1 = arith.constant 0 : i32
    return %c0_i32, %c0_i32_0 : i32, i32
  }
  func.func @transform_5(%arg0: i32, %arg1: i32) -> (i32, i32, i32) {
    %c0_i32 = arith.constant 0 : i32
    %c0_i32_0 = arith.constant 0 : i32
    %c0_i32_1 = arith.constant 0 : i32
    return %arg0, %c0_i32, %c0_i32_0 : i32, i32, i32
  }
}

module attributes {stable_mosaic.version = 11 : i64} {
  func.func @_head_kernel(%arg0: i32, %arg1: memref<4x32xf32, #tpu.memory_space<vmem>>, %arg2: memref<32x32xf32, #tpu.memory_space<vmem>>, %arg3: memref<1x32xf32, #tpu.memory_space<vmem>>, %arg4: memref<32x32xf32, #tpu.memory_space<vmem>>, %arg5: memref<1x32xf32, #tpu.memory_space<vmem>>, %arg6: memref<32x6xf32, #tpu.memory_space<vmem>>, %arg7: memref<1x6xf32, #tpu.memory_space<vmem>>, %arg8: memref<1x6xf32, #tpu.memory_space<vmem>>, %arg9: memref<1x6xf32, #tpu.memory_space<vmem>>, %arg10: memref<6x2xf32, #tpu.memory_space<vmem>>, %arg11: memref<6x2xf32, #tpu.memory_space<vmem>>, %arg12: memref<1x2xf32, #tpu.memory_space<vmem>>, %arg13: memref<1x2xf32, #tpu.memory_space<vmem>>, %arg14: memref<4x2xf32, #tpu.memory_space<vmem>>) attributes {dimension_semantics = [#tpu.dimension_semantics<arbitrary>], iteration_bounds = array<i64: 1>, scalar_prefetch = 0 : i64, scratch_operands = 0 : i64, tpu.core_type = #tpu.core_type<tc>, window_params = [{pipeline_mode = #tpu.pipeline_mode<synchronous>, transform_indices = @transform_0, window_bounds = array<i64: 4, 32>}, {pipeline_mode = #tpu.pipeline_mode<synchronous>, transform_indices = @transform_1, window_bounds = array<i64: 32, 32>}, {pipeline_mode = #tpu.pipeline_mode<synchronous>, transform_indices = @transform_2, window_bounds = array<i64: 1, 32>}, {pipeline_mode = #tpu.pipeline_mode<synchronous>, transform_indices = @transform_3, window_bounds = array<i64: 32, 32>}, {pipeline_mode = #tpu.pipeline_mode<synchronous>, transform_indices = @transform_4, window_bounds = array<i64: 1, 32>}, {pipeline_mode = #tpu.pipeline_mode<synchronous>, transform_indices = @transform_5, window_bounds = array<i64: 32, 6>}, {pipeline_mode = #tpu.pipeline_mode<synchronous>, transform_indices = @transform_6, window_bounds = array<i64: 1, 6>}, {pipeline_mode = #tpu.pipeline_mode<synchronous>, transform_indices = @transform_7, window_bounds = array<i64: 1, 6>}, {pipeline_mode = #tpu.pipeline_mode<synchronous>, transform_indices = @transform_8, window_bounds = array<i64: 1, 6>}, {pipeline_mode = #tpu.pipeline_mode<synchronous>, transform_indices = @transform_9, window_bounds = array<i64: 6, 2>}, {pipeline_mode = #tpu.pipeline_mode<synchronous>, transform_indices = @transform_10, window_bounds = array<i64: 6, 2>}, {pipeline_mode = #tpu.pipeline_mode<synchronous>, transform_indices = @transform_11, window_bounds = array<i64: 1, 2>}, {pipeline_mode = #tpu.pipeline_mode<synchronous>, transform_indices = @transform_12, window_bounds = array<i64: 1, 2>}, {pipeline_mode = #tpu.pipeline_mode<synchronous>, transform_indices = @transform_13, window_bounds = array<i64: 4, 2>}]} {
    %c0 = arith.constant 0 : index
    %c0_0 = arith.constant 0 : index
    %0 = vector.load %arg1[%c0, %c0_0] : memref<4x32xf32, #tpu.memory_space<vmem>>, vector<4x32xf32>
    %c0_1 = arith.constant 0 : index
    %c0_2 = arith.constant 0 : index
    %1 = vector.load %arg2[%c0_1, %c0_2] : memref<32x32xf32, #tpu.memory_space<vmem>>, vector<32x32xf32>
    %cst = arith.constant dense<0.000000e+00> : vector<4x32xf32>
    %2 = tpu.matmul %0, %1, %cst {dimension_numbers = #tpu.dot_dimension_numbers<[1], [0], [0], [1], [0, 0, 1, 1], [], []>} : vector<4x32xf32>, vector<32x32xf32>, vector<4x32xf32> -> vector<4x32xf32>
    %c0_3 = arith.constant 0 : index
    %c0_4 = arith.constant 0 : index
    %3 = vector.load %arg3[%c0_3, %c0_4] : memref<1x32xf32, #tpu.memory_space<vmem>>, vector<1x32xf32>
    %4 = vector.broadcast %3 : vector<1x32xf32> to vector<4x32xf32>
    %5 = arith.addf %2, %4 : vector<4x32xf32>
    %cst_5 = arith.constant 0.000000e+00 : f32
    %6 = vector.broadcast %cst_5 : f32 to vector<4x32xf32>
    %7 = arith.maximumf %5, %6 : vector<4x32xf32>
    %c0_6 = arith.constant 0 : index
    %c0_7 = arith.constant 0 : index
    %8 = vector.load %arg4[%c0_6, %c0_7] : memref<32x32xf32, #tpu.memory_space<vmem>>, vector<32x32xf32>
    %cst_8 = arith.constant dense<0.000000e+00> : vector<4x32xf32>
    %9 = tpu.matmul %7, %8, %cst_8 {dimension_numbers = #tpu.dot_dimension_numbers<[1], [0], [0], [1], [0, 0, 1, 1], [], []>} : vector<4x32xf32>, vector<32x32xf32>, vector<4x32xf32> -> vector<4x32xf32>
    %c0_9 = arith.constant 0 : index
    %c0_10 = arith.constant 0 : index
    %10 = vector.load %arg5[%c0_9, %c0_10] : memref<1x32xf32, #tpu.memory_space<vmem>>, vector<1x32xf32>
    %11 = vector.broadcast %10 : vector<1x32xf32> to vector<4x32xf32>
    %12 = arith.addf %9, %11 : vector<4x32xf32>
    %cst_11 = arith.constant 0.000000e+00 : f32
    %13 = vector.broadcast %cst_11 : f32 to vector<4x32xf32>
    %14 = arith.maximumf %12, %13 : vector<4x32xf32>
    %c0_12 = arith.constant 0 : index
    %c0_13 = arith.constant 0 : index
    %15 = vector.load %arg6[%c0_12, %c0_13] : memref<32x6xf32, #tpu.memory_space<vmem>>, vector<32x6xf32>
    %cst_14 = arith.constant dense<0.000000e+00> : vector<4x6xf32>
    %16 = tpu.matmul %14, %15, %cst_14 {dimension_numbers = #tpu.dot_dimension_numbers<[1], [0], [0], [1], [0, 0, 1, 1], [], []>} : vector<4x32xf32>, vector<32x6xf32>, vector<4x6xf32> -> vector<4x6xf32>
    %c0_15 = arith.constant 0 : index
    %c0_16 = arith.constant 0 : index
    %17 = vector.load %arg7[%c0_15, %c0_16] : memref<1x6xf32, #tpu.memory_space<vmem>>, vector<1x6xf32>
    %18 = vector.broadcast %17 : vector<1x6xf32> to vector<4x6xf32>
    %19 = arith.addf %16, %18 : vector<4x6xf32>
    %cst_17 = arith.constant dense<0.000000e+00> : vector<6xf32>
    %20 = vector.multi_reduction <add>, %19, %cst_17 [0] : vector<4x6xf32> to vector<6xf32>
    %21 = vector.shape_cast %20 : vector<6xf32> to vector<1x6xf32>
    %cst_18 = arith.constant 4.000000e+00 : f32
    %22 = vector.broadcast %cst_18 : f32 to vector<1x6xf32>
    %23 = arith.divf %21, %22 : vector<1x6xf32>
    %24 = vector.broadcast %23 : vector<1x6xf32> to vector<4x6xf32>
    %25 = arith.subf %19, %24 : vector<4x6xf32>
    %26 = arith.mulf %25, %25 : vector<4x6xf32>
    %cst_19 = arith.constant dense<0.000000e+00> : vector<6xf32>
    %27 = vector.multi_reduction <add>, %26, %cst_19 [0] : vector<4x6xf32> to vector<6xf32>
    %28 = vector.shape_cast %27 : vector<6xf32> to vector<1x6xf32>
    %cst_20 = arith.constant 4.000000e+00 : f32
    %29 = vector.broadcast %cst_20 : f32 to vector<1x6xf32>
    %30 = arith.divf %28, %29 : vector<1x6xf32>
    %cst_21 = arith.constant 9.99999974E-6 : f32
    %31 = vector.broadcast %cst_21 : f32 to vector<1x6xf32>
    %32 = arith.addf %30, %31 : vector<1x6xf32>
    %33 = math.rsqrt %32 : vector<1x6xf32>
    %34 = vector.broadcast %33 : vector<1x6xf32> to vector<4x6xf32>
    %35 = arith.mulf %25, %34 : vector<4x6xf32>
    %c0_22 = arith.constant 0 : index
    %c0_23 = arith.constant 0 : index
    %36 = vector.load %arg8[%c0_22, %c0_23] : memref<1x6xf32, #tpu.memory_space<vmem>>, vector<1x6xf32>
    %37 = vector.broadcast %36 : vector<1x6xf32> to vector<4x6xf32>
    %38 = arith.mulf %35, %37 : vector<4x6xf32>
    %c0_24 = arith.constant 0 : index
    %c0_25 = arith.constant 0 : index
    %39 = vector.load %arg9[%c0_24, %c0_25] : memref<1x6xf32, #tpu.memory_space<vmem>>, vector<1x6xf32>
    %40 = vector.broadcast %39 : vector<1x6xf32> to vector<4x6xf32>
    %41 = arith.addf %38, %40 : vector<4x6xf32>
    %42 = arith.mulf %41, %41 : vector<4x6xf32>
    %c0_26 = arith.constant 0 : index
    %c0_27 = arith.constant 0 : index
    %43 = vector.load %arg10[%c0_26, %c0_27] : memref<6x2xf32, #tpu.memory_space<vmem>>, vector<6x2xf32>
    %cst_28 = arith.constant dense<0.000000e+00> : vector<4x2xf32>
    %44 = tpu.matmul %42, %43, %cst_28 {dimension_numbers = #tpu.dot_dimension_numbers<[1], [0], [0], [1], [0, 0, 1, 1], [], []>} : vector<4x6xf32>, vector<6x2xf32>, vector<4x2xf32> -> vector<4x2xf32>
    %cst_29 = arith.constant -5.000000e-01 : f32
    %45 = vector.broadcast %cst_29 : f32 to vector<4x2xf32>
    %46 = arith.mulf %45, %44 : vector<4x2xf32>
    %c0_30 = arith.constant 0 : index
    %c0_31 = arith.constant 0 : index
    %47 = vector.load %arg11[%c0_30, %c0_31] : memref<6x2xf32, #tpu.memory_space<vmem>>, vector<6x2xf32>
    %cst_32 = arith.constant dense<0.000000e+00> : vector<4x2xf32>
    %48 = tpu.matmul %41, %47, %cst_32 {dimension_numbers = #tpu.dot_dimension_numbers<[1], [0], [0], [1], [0, 0, 1, 1], [], []>} : vector<4x6xf32>, vector<6x2xf32>, vector<4x2xf32> -> vector<4x2xf32>
    %49 = arith.addf %46, %48 : vector<4x2xf32>
    %c0_33 = arith.constant 0 : index
    %c0_34 = arith.constant 0 : index
    %50 = vector.load %arg12[%c0_33, %c0_34] : memref<1x2xf32, #tpu.memory_space<vmem>>, vector<1x2xf32>
    %51 = vector.broadcast %50 : vector<1x2xf32> to vector<4x2xf32>
    %52 = arith.addf %49, %51 : vector<4x2xf32>
    %cst_35 = arith.constant 8.000000e+01 : f32
    %53 = vector.broadcast %cst_35 : f32 to vector<4x2xf32>
    %54 = arith.minimumf %52, %53 : vector<4x2xf32>
    %c0_36 = arith.constant 0 : index
    %c0_37 = arith.constant 0 : index
    %55 = vector.load %arg13[%c0_36, %c0_37] : memref<1x2xf32, #tpu.memory_space<vmem>>, vector<1x2xf32>
    %56 = math.exp %54 : vector<4x2xf32>
    %57 = vector.broadcast %55 : vector<1x2xf32> to vector<4x2xf32>
    %58 = arith.mulf %57, %56 : vector<4x2xf32>
    %cst_38 = arith.constant 1.000000e+00 : f32
    %59 = vector.broadcast %cst_38 : f32 to vector<4x2xf32>
    %60 = arith.addf %59, %58 : vector<4x2xf32>
    %c0_39 = arith.constant 0 : index
    %c0_40 = arith.constant 0 : index
    %61 = vector.load %arg14[%c0_39, %c0_40] : memref<4x2xf32, #tpu.memory_space<vmem>>, vector<4x2xf32>
    tpu.vector_store %arg14[%c0_39, %c0_40], %60 {strides = array<i32>} : memref<4x2xf32, #tpu.memory_space<vmem>>, vector<4x2xf32>,
    return
  }
  func.func @transform_0(%arg0: i32) -> (i32, i32) {
    %c0_i32 = arith.constant 0 : i32
    %c0_i32_0 = arith.constant 0 : i32
    %c0_i32_1 = arith.constant 0 : i32
    return %c0_i32, %c0_i32_0 : i32, i32
  }
  func.func @transform_1(%arg0: i32) -> (i32, i32) {
    %c0_i32 = arith.constant 0 : i32
    %c0_i32_0 = arith.constant 0 : i32
    %c0_i32_1 = arith.constant 0 : i32
    return %c0_i32, %c0_i32_0 : i32, i32
  }
  func.func @transform_2(%arg0: i32) -> (i32, i32) {
    %c0_i32 = arith.constant 0 : i32
    %c0_i32_0 = arith.constant 0 : i32
    %c0_i32_1 = arith.constant 0 : i32
    return %c0_i32, %c0_i32_0 : i32, i32
  }
  func.func @transform_3(%arg0: i32) -> (i32, i32) {
    %c0_i32 = arith.constant 0 : i32
    %c0_i32_0 = arith.constant 0 : i32
    %c0_i32_1 = arith.constant 0 : i32
    return %c0_i32, %c0_i32_0 : i32, i32
  }
  func.func @transform_4(%arg0: i32) -> (i32, i32) {
    %c0_i32 = arith.constant 0 : i32
    %c0_i32_0 = arith.constant 0 : i32
    %c0_i32_1 = arith.constant 0 : i32
    return %c0_i32, %c0_i32_0 : i32, i32
  }
  func.func @transform_5(%arg0: i32) -> (i32, i32) {
    %c0_i32 = arith.constant 0 : i32
    %c0_i32_0 = arith.constant 0 : i32
    %c0_i32_1 = arith.constant 0 : i32
    return %c0_i32, %c0_i32_0 : i32, i32
  }
  func.func @transform_6(%arg0: i32) -> (i32, i32) {
    %c0_i32 = arith.constant 0 : i32
    %c0_i32_0 = arith.constant 0 : i32
    %c0_i32_1 = arith.constant 0 : i32
    return %c0_i32, %c0_i32_0 : i32, i32
  }
  func.func @transform_7(%arg0: i32) -> (i32, i32) {
    %c0_i32 = arith.constant 0 : i32
    %c0_i32_0 = arith.constant 0 : i32
    %c0_i32_1 = arith.constant 0 : i32
    return %c0_i32, %c0_i32_0 : i32, i32
  }
  func.func @transform_8(%arg0: i32) -> (i32, i32) {
    %c0_i32 = arith.constant 0 : i32
    %c0_i32_0 = arith.constant 0 : i32
    %c0_i32_1 = arith.constant 0 : i32
    return %c0_i32, %c0_i32_0 : i32, i32
  }
  func.func @transform_9(%arg0: i32) -> (i32, i32) {
    %c0_i32 = arith.constant 0 : i32
    %c0_i32_0 = arith.constant 0 : i32
    %c0_i32_1 = arith.constant 0 : i32
    return %c0_i32, %c0_i32_0 : i32, i32
  }
  func.func @transform_10(%arg0: i32) -> (i32, i32) {
    %c0_i32 = arith.constant 0 : i32
    %c0_i32_0 = arith.constant 0 : i32
    %c0_i32_1 = arith.constant 0 : i32
    return %c0_i32, %c0_i32_0 : i32, i32
  }
  func.func @transform_11(%arg0: i32) -> (i32, i32) {
    %c0_i32 = arith.constant 0 : i32
    %c0_i32_0 = arith.constant 0 : i32
    %c0_i32_1 = arith.constant 0 : i32
    return %c0_i32, %c0_i32_0 : i32, i32
  }
  func.func @transform_12(%arg0: i32) -> (i32, i32) {
    %c0_i32 = arith.constant 0 : i32
    %c0_i32_0 = arith.constant 0 : i32
    %c0_i32_1 = arith.constant 0 : i32
    return %c0_i32, %c0_i32_0 : i32, i32
  }
  func.func @transform_13(%arg0: i32) -> (i32, i32) {
    %c0_i32 = arith.constant 0 : i32
    %c0_i32_0 = arith.constant 0 : i32
    %c0_i32_1 = arith.constant 0 : i32
    return %c0_i32, %c0_i32_0 : i32, i32
  }
}

</mosaic_0001>

<llo_original>
// kernel: attentive_fp_post_forward.3
$region0: #{attentive_fp_post_forward.3}
  #allocation0 [shape = 'u32[]', space=smem, size = 0x4, offset = 0x4, fixed_abs, tag = 'smem constant byte address 0x4 - core index']
  #allocation1 [shape = 'u32[144,128]{1,0:T(1,128)}', space=vmem, size = 0x12000, scoped, tag = 'internal scratch']
  %s0 = inlined_call_operand.vmem [shape: f32[4,32], index: 0, kind: input, shape index: {}]
  %s1 = inlined_call_operand.vmem [shape: f32[32,32], index: 1, kind: input, shape index: {}]
  %s2 = inlined_call_operand.vmem [shape: f32[1,32], index: 2, kind: input, shape index: {}]
  %s3 = inlined_call_operand.vmem [shape: f32[32,32], index: 3, kind: input, shape index: {}]
  %s4 = inlined_call_operand.vmem [shape: f32[1,32], index: 4, kind: input, shape index: {}]
  %s5 = inlined_call_operand.vmem [shape: f32[32,6], index: 5, kind: input, shape index: {}]
  %s6 = inlined_call_operand.vmem [shape: f32[1,6], index: 6, kind: input, shape index: {}]
  %s7 = inlined_call_operand.vmem [shape: f32[1,6], index: 7, kind: input, shape index: {}]
  %s8 = inlined_call_operand.vmem [shape: f32[1,6], index: 8, kind: input, shape index: {}]
  %s9 = inlined_call_operand.vmem [shape: f32[6,2], index: 9, kind: input, shape index: {}]
  %s10 = inlined_call_operand.vmem [shape: f32[6,2], index: 10, kind: input, shape index: {}]
  %s11 = inlined_call_operand.vmem [shape: f32[1,2], index: 11, kind: input, shape index: {}]
  %s12 = inlined_call_operand.vmem [shape: f32[1,2], index: 12, kind: input, shape index: {}]
  %s13 = inlined_call_operand.vmem [shape: f32[4,2], index: 13, kind: output, shape index: {}]
  %s14 = sld [smem:[#allocation0]]
  $region62: #{attentive_fp_post_forward.3} parent=0
    _
  %s16 = ssub.s32 1, %s14
  %s17 = scalar_select 0, %s16, %s14
  // Predicated region
  $region2: #{attentive_fp_post_forward.3} parent=0 // pred_check
    _
  $region3: #{attentive_fp_post_forward.3} parent=0 // pred_check_branch
    %19 = sbr.rel (0) target = $region5
  $region4: #{attentive_fp_post_forward.3} parent=0 // pred_region
    _
  $region5: #{attentive_fp_post_forward.3} parent=0 // pred_fallthru
    _
  // Predicated region
  $region6: #{attentive_fp_post_forward.3} parent=0 // pred_check
    _
  $region7: #{attentive_fp_post_forward.3} parent=0 // pred_check_branch
    %21 = sbr.rel (0) target = $region9
  $region8: #{attentive_fp_post_forward.3} parent=0 // pred_region
    _
  $region9: #{attentive_fp_post_forward.3} parent=0 // pred_fallthru
    _
  // Predicated region
  $region10: #{attentive_fp_post_forward.3} parent=0 // pred_check
    _
  $region11: #{attentive_fp_post_forward.3} parent=0 // pred_check_branch
    %23 = sbr.rel (0) target = $region13
  $region12: #{attentive_fp_post_forward.3} parent=0 // pred_region
    _
  $region13: #{attentive_fp_post_forward.3} parent=0 // pred_fallthru
    _
  // Predicated region
  $region14: #{attentive_fp_post_forward.3} parent=0 // pred_check
    _
  $region15: #{attentive_fp_post_forward.3} parent=0 // pred_check_branch
    %25 = sbr.rel (0) target = $region17
  $region16: #{attentive_fp_post_forward.3} parent=0 // pred_region
    _
  $region17: #{attentive_fp_post_forward.3} parent=0 // pred_fallthru
    _
  // Predicated region
  $region18: #{attentive_fp_post_forward.3} parent=0 // pred_check
    _
  $region19: #{attentive_fp_post_forward.3} parent=0 // pred_check_branch
    %27 = sbr.rel (0) target = $region21
  $region20: #{attentive_fp_post_forward.3} parent=0 // pred_region
    _
  $region21: #{attentive_fp_post_forward.3} parent=0 // pred_fallthru
    _
  // Predicated region
  $region22: #{attentive_fp_post_forward.3} parent=0 // pred_check
    _
  $region23: #{attentive_fp_post_forward.3} parent=0 // pred_check_branch
    %29 = sbr.rel (0) target = $region25
  $region24: #{attentive_fp_post_forward.3} parent=0 // pred_region
    _
  $region25: #{attentive_fp_post_forward.3} parent=0 // pred_fallthru
    _
  // Predicated region
  $region26: #{attentive_fp_post_forward.3} parent=0 // pred_check
    _
  $region27: #{attentive_fp_post_forward.3} parent=0 // pred_check_branch
    %31 = sbr.rel (0) target = $region29
  $region28: #{attentive_fp_post_forward.3} parent=0 // pred_region
    _
  $region29: #{attentive_fp_post_forward.3} parent=0 // pred_fallthru
    _
  // Predicated region
  $region30: #{attentive_fp_post_forward.3} parent=0 // pred_check
    _
  $region31: #{attentive_fp_post_forward.3} parent=0 // pred_check_branch
    %33 = sbr.rel (0) target = $region33
  $region32: #{attentive_fp_post_forward.3} parent=0 // pred_region
    _
  $region33: #{attentive_fp_post_forward.3} parent=0 // pred_fallthru
    _
  // Predicated region
  $region34: #{attentive_fp_post_forward.3} parent=0 // pred_check
    _
  $region35: #{attentive_fp_post_forward.3} parent=0 // pred_check_branch
    %35 = sbr.rel (0) target = $region37
  $region36: #{attentive_fp_post_forward.3} parent=0 // pred_region
    _
  $region37: #{attentive_fp_post_forward.3} parent=0 // pred_fallthru
    _
  // Predicated region
  $region38: #{attentive_fp_post_forward.3} parent=0 // pred_check
    _
  $region39: #{attentive_fp_post_forward.3} parent=0 // pred_check_branch
    %37 = sbr.rel (0) target = $region41
  $region40: #{attentive_fp_post_forward.3} parent=0 // pred_region
    _
  $region41: #{attentive_fp_post_forward.3} parent=0 // pred_fallthru
    _
  // Predicated region
  $region42: #{attentive_fp_post_forward.3} parent=0 // pred_check
    _
  $region43: #{attentive_fp_post_forward.3} parent=0 // pred_check_branch
    %39 = sbr.rel (0) target = $region45
  $region44: #{attentive_fp_post_forward.3} parent=0 // pred_region
    _
  $region45: #{attentive_fp_post_forward.3} parent=0 // pred_fallthru
    _
  // Predicated region
  $region46: #{attentive_fp_post_forward.3} parent=0 // pred_check
    _
  $region47: #{attentive_fp_post_forward.3} parent=0 // pred_check_branch
    %41 = sbr.rel (0) target = $region49
  $region48: #{attentive_fp_post_forward.3} parent=0 // pred_region
    _
  $region49: #{attentive_fp_post_forward.3} parent=0 // pred_fallthru
    _
  // Predicated region
  $region50: #{attentive_fp_post_forward.3} parent=0 // pred_check
    _
  $region51: #{attentive_fp_post_forward.3} parent=0 // pred_check_branch
    %43 = sbr.rel (0) target = $region53
  $region52: #{attentive_fp_post_forward.3} parent=0 // pred_region
    _
  $region53: #{attentive_fp_post_forward.3} parent=0 // pred_fallthru
    _
  %v44 = vld [vmem:[%s0] sm:$0xf]
  %v45 = vld [vmem:[%s1] sm:$0xff]
  %v46 = vld [vmem:[%s1 + $0x8] sm:$0xff]
  %v47 = vld [vmem:[%s1 + $0x10] sm:$0xff]
  %v48 = vld [vmem:[%s1 + $0x18] sm:$0xff]
  %v49 = vld [vmem:[%s2] sm:$0x1]
  %v51 = vlaneseq
  %v52 = vshrl.u32 %v51, 7
  %v53 = vsub.s32 0, %v52
  %v54 = vrot.slane %v49, %v53
  %vm56 = vcmask 261120
  %v58 = vsel %vm56, %v44, 0
  %60 = vmatprep.subr.mxu0 0.0
  %61 = vmatpush1.msra.mxu0 %v45
  %62 = vmatprep.subr.mxu0 0.0
  %63 = vmatpush1.msra.mxu0 %v46
  %64 = vmatprep.subr.mxu0 0.0
  %65 = vmatpush1.msra.mxu0 %v47
  %66 = vmatprep.subr.mxu0 0.0
  %67 = vmatpush1.msra.mxu0 %v48
  %68 = vmatprep.subr.mxu0 0.0
  %69 = vmatpush1.msra.mxu0 0.0
  %70 = vmatprep.subr.mxu0 0.0
  %71 = vmatpush1.msra.mxu0 0.0
  %72 = vmatprep.subr.mxu0 0.0
  %73 = vmatpush1.msra.mxu0 0.0
  %74 = vmatprep.subr.mxu0 0.0
  %75 = vmatpush1.msra.mxu0 0.0
  %76 = vmatprep.subr.mxu0 0.0
  %77 = vmatpush1.msra.mxu0 0.0
  %78 = vmatprep.subr.mxu0 0.0
  %79 = vmatpush1.msra.mxu0 0.0
  %80 = vmatprep.subr.mxu0 0.0
  %81 = vmatpush1.msra.mxu0 0.0
  %82 = vmatprep.subr.mxu0 0.0
  %83 = vmatpush1.msra.mxu0 0.0
  %84 = vmatprep.subr.mxu0 0.0
  %85 = vmatpush1.msra.mxu0 0.0
  %86 = vmatprep.subr.mxu0 0.0
  %87 = vmatpush1.msra.mxu0 0.0
  %88 = vmatprep.subr.mxu0 0.0
  %89 = vmatpush1.msra.mxu0 0.0
  %90 = vmatprep.subr.mxu0 0.0
  %91 = vmatpush1.msra.mxu0 0.0
  %92 = vmatprep.subr.mxu0 0.0
  %93 = vmatpush1.msra.mxu0 0.0
  %94 = vmatprep.subr.mxu0 0.0
  %95 = vmatpush1.msra.mxu0 0.0
  %96 = vmatprep.subr.mxu0 0.0
  %97 = vmatpush1.msra.mxu0 0.0
  %98 = vmatprep.subr.mxu0 0.0
  %99 = vmatpush1.msra.mxu0 0.0
  %100 = vmatprep.subr.mxu0 0.0
  %101 = vmatpush1.msra.mxu0 0.0
  %102 = vmatprep.subr.mxu0 0.0
  %103 = vmatpush1.msra.mxu0 0.0
  %104 = vmatprep.subr.mxu0 0.0
  %105 = vmatpush1.msra.mxu0 0.0
  %106 = vmatprep.subr.mxu0 0.0
  %107 = vmatpush1.msra.mxu0 0.0
  %108 = vmatprep.subr.mxu0 0.0
  %109 = vmatpush1.msra.mxu0 0.0
  %110 = vmatprep.subr.mxu0 0.0
  %111 = vmatpush1.msra.mxu0 0.0
  %112 = vmatprep.subr.mxu0 0.0
  %113 = vmatpush1.msra.mxu0 0.0
  %114 = vmatprep.subr.mxu0 0.0
  %115 = vmatpush1.msra.mxu0 0.0
  %116 = vmatprep.subr.mxu0 0.0
  %117 = vmatpush1.msra.mxu0 0.0
  %118 = vmatprep.subr.mxu0 0.0
  %119 = vmatpush1.msra.mxu0 0.0
  %120 = vmatprep.subr.mxu0 0.0
  %121 = vmatpush1.msra.mxu0 0.0
  %122 = vmatprep.subr.mxu0 0.0
  %123 = vmatpush1.msra.mxu0 0.0
  %124 = vmatprep.mubr.f32.mxu0 0.0
  %125 = vmatmul.mubr.f32.gmra.mrb[0].mxu0 %v58
  %v126 = vpop.f32.mrb[0].mxu0
  %v127 = vadd.f32 %v54, %v126
  %v128 = vpop.f32.mrb[0].mxu0
  %129 = vdwg.mxu0
  %v130 = vmax.f32 %v127, 0.0
  %v131 = vld [vmem:[%s3] sm:$0xff]
  %v132 = vld [vmem:[%s3 + $0x8] sm:$0xff]
  %v133 = vld [vmem:[%s3 + $0x10] sm:$0xff]
  %v134 = vld [vmem:[%s3 + $0x18] sm:$0xff]
  %v135 = vld [vmem:[%s4] sm:$0x1]
  %v137 = vlaneseq
  %v138 = vshrl.u32 %v137, 7
  %v139 = vsub.s32 0, %v138
  %v140 = vrot.slane %v135, %v139
  %v143 = vsel %vm56, %v130, 0
  %145 = vmatprep.subr.mxu0 0.0
  %146 = vmatpush1.msra.mxu0 %v131
  %147 = vmatprep.subr.mxu0 0.0
  %148 = vmatpush1.msra.mxu0 %v132
  %149 = vmatprep.subr.mxu0 0.0
  %150 = vmatpush1.msra.mxu0 %v133
  %151 = vmatprep.subr.mxu0 0.0
  %152 = vmatpush1.msra.mxu0 %v134
  %153 = vmatprep.subr.mxu0 0.0
  %154 = vmatpush1.msra.mxu0 0.0
  %155 = vmatprep.subr.mxu0 0.0
  %156 = vmatpush1.msra.mxu0 0.0
  %157 = vmatprep.subr.mxu0 0.0
  %158 = vmatpush1.msra.mxu0 0.0
  %159 = vmatprep.subr.mxu0 0.0
  %160 = vmatpush1.msra.mxu0 0.0
  %161 = vmatprep.subr.mxu0 0.0
  %162 = vmatpush1.msra.mxu0 0.0
  %163 = vmatprep.subr.mxu0 0.0
  %164 = vmatpush1.msra.mxu0 0.0
  %165 = vmatprep.subr.mxu0 0.0
  %166 = vmatpush1.msra.mxu0 0.0
  %167 = vmatprep.subr.mxu0 0.0
  %168 = vmatpush1.msra.mxu0 0.0
  %169 = vmatprep.subr.mxu0 0.0
  %170 = vmatpush1.msra.mxu0 0.0
  %171 = vmatprep.subr.mxu0 0.0
  %172 = vmatpush1.msra.mxu0 0.0
  %173 = vmatprep.subr.mxu0 0.0
  %174 = vmatpush1.msra.mxu0 0.0
  %175 = vmatprep.subr.mxu0 0.0
  %176 = vmatpush1.msra.mxu0 0.0
  %177 = vmatprep.subr.mxu0 0.0
  %178 = vmatpush1.msra.mxu0 0.0
  %179 = vmatprep.subr.mxu0 0.0
  %180 = vmatpush1.msra.mxu0 0.0
  %181 = vmatprep.subr.mxu0 0.0
  %182 = vmatpush1.msra.mxu0 0.0
  %183 = vmatprep.subr.mxu0 0.0
  %184 = vmatpush1.msra.mxu0 0.0
  %185 = vmatprep.subr.mxu0 0.0
  %186 = vmatpush1.msra.mxu0 0.0
  %187 = vmatprep.subr.mxu0 0.0
  %188 = vmatpush1.msra.mxu0 0.0
  %189 = vmatprep.subr.mxu0 0.0
  %190 = vmatpush1.msra.mxu0 0.0
  %191 = vmatprep.subr.mxu0 0.0
  %192 = vmatpush1.msra.mxu0 0.0
  %193 = vmatprep.subr.mxu0 0.0
  %194 = vmatpush1.msra.mxu0 0.0
  %195 = vmatprep.subr.mxu0 0.0
  %196 = vmatpush1.msra.mxu0 0.0
  %197 = vmatprep.subr.mxu0 0.0
  %198 = vmatpush1.msra.mxu0 0.0
  %199 = vmatprep.subr.mxu0 0.0
  %200 = vmatpush1.msra.mxu0 0.0
  %201 = vmatprep.subr.mxu0 0.0
  %202 = vmatpush1.msra.mxu0 0.0
  %203 = vmatprep.subr.mxu0 0.0
  %204 = vmatpush1.msra.mxu0 0.0
  %205 = vmatprep.subr.mxu0 0.0
  %206 = vmatpush1.msra.mxu0 0.0
  %207 = vmatprep.subr.mxu0 0.0
  %208 = vmatpush1.msra.mxu0 0.0
  %209 = vmatprep.mubr.f32.mxu0 0.0
  %210 = vmatmul.mubr.f32.gmra.mrb[0].mxu0 %v143
  %v211 = vpop.f32.mrb[0].mxu0
  %v212 = vadd.f32 %v140, %v211
  %v213 = vpop.f32.mrb[0].mxu0
  %214 = vdwg.mxu0
  %v215 = vmax.f32 %v212, 0.0
  %v216 = vld [vmem:[%s5] sm:$0xff]
  %v217 = vld [vmem:[%s5 + $0x8] sm:$0xff]
  %v218 = vld [vmem:[%s5 + $0x10] sm:$0xff]
  %v219 = vld [vmem:[%s5 + $0x18] sm:$0xff]
  %v220 = vld [vmem:[%s6] sm:$0x1]
  %v222 = vlaneseq
  %v223 = vshrl.u32 %v222, 7
  %v224 = vsub.s32 0, %v223
  %v225 = vrot.slane %v220, %v224
  %v228 = vsel %vm56, %v215, 0
  %230 = vmatprep.subr.mxu0 0.0
  %231 = vmatpush1.msra.mxu0 %v216
  %232 = vmatprep.subr.mxu0 0.0
  %233 = vmatpush1.msra.mxu0 %v217
  %234 = vmatprep.subr.mxu0 0.0
  %235 = vmatpush1.msra.mxu0 %v218
  %236 = vmatprep.subr.mxu0 0.0
  %237 = vmatpush1.msra.mxu0 %v219
  %238 = vmatprep.subr.mxu0 0.0
  %239 = vmatpush1.msra.mxu0 0.0
  %240 = vmatprep.subr.mxu0 0.0
  %241 = vmatpush1.msra.mxu0 0.0
  %242 = vmatprep.subr.mxu0 0.0
  %243 = vmatpush1.msra.mxu0 0.0
  %244 = vmatprep.subr.mxu0 0.0
  %245 = vmatpush1.msra.mxu0 0.0
  %246 = vmatprep.subr.mxu0 0.0
  %247 = vmatpush1.msra.mxu0 0.0
  %248 = vmatprep.subr.mxu0 0.0
  %249 = vmatpush1.msra.mxu0 0.0
  %250 = vmatprep.subr.mxu0 0.0
  %251 = vmatpush1.msra.mxu0 0.0
  %252 = vmatprep.subr.mxu0 0.0
  %253 = vmatpush1.msra.mxu0 0.0
  %254 = vmatprep.subr.mxu0 0.0
  %255 = vmatpush1.msra.mxu0 0.0
  %256 = vmatprep.subr.mxu0 0.0
  %257 = vmatpush1.msra.mxu0 0.0
  %258 = vmatprep.subr.mxu0 0.0
  %259 = vmatpush1.msra.mxu0 0.0
  %260 = vmatprep.subr.mxu0 0.0
  %261 = vmatpush1.msra.mxu0 0.0
  %262 = vmatprep.subr.mxu0 0.0
  %263 = vmatpush1.msra.mxu0 0.0
  %264 = vmatprep.subr.mxu0 0.0
  %265 = vmatpush1.msra.mxu0 0.0
  %266 = vmatprep.subr.mxu0 0.0
  %267 = vmatpush1.msra.mxu0 0.0
  %268 = vmatprep.subr.mxu0 0.0
  %269 = vmatpush1.msra.mxu0 0.0
  %270 = vmatprep.subr.mxu0 0.0
  %271 = vmatpush1.msra.mxu0 0.0
  %272 = vmatprep.subr.mxu0 0.0
  %273 = vmatpush1.msra.mxu0 0.0
  %274 = vmatprep.subr.mxu0 0.0
  %275 = vmatpush1.msra.mxu0 0.0
  %276 = vmatprep.subr.mxu0 0.0
  %277 = vmatpush1.msra.mxu0 0.0
  %278 = vmatprep.subr.mxu0 0.0
  %279 = vmatpush1.msra.mxu0 0.0
  %280 = vmatprep.subr.mxu0 0.0
  %281 = vmatpush1.msra.mxu0 0.0
  %282 = vmatprep.subr.mxu0 0.0
  %283 = vmatpush1.msra.mxu0 0.0
  %284 = vmatprep.subr.mxu0 0.0
  %285 = vmatpush1.msra.mxu0 0.0
  %286 = vmatprep.subr.mxu0 0.0
  %287 = vmatpush1.msra.mxu0 0.0
  %288 = vmatprep.subr.mxu0 0.0
  %289 = vmatpush1.msra.mxu0 0.0
  %290 = vmatprep.subr.mxu0 0.0
  %291 = vmatpush1.msra.mxu0 0.0
  %292 = vmatprep.subr.mxu0 0.0
  %293 = vmatpush1.msra.mxu0 0.0
  %294 = vmatprep.mubr.f32.mxu0 0.0
  %295 = vmatmul.mubr.f32.gmra.mrb[0].mxu0 %v228
  %v296 = vpop.f32.mrb[0].mxu0
  %v297 = vadd.f32 %v225, %v296
  %v298 = vpop.f32.mrb[0].mxu0
  %299 = vdwg.mxu0
  %vm300 = vcmask 44032
  %v301 = vsel %vm300, %v297, 0.0
  %v302 = vrot.slane %v301, 4
  %v303 = vadd.f32 %v301, %v302
  %v304 = vrot.slane %v303, 2
  %v305 = vadd.f32 %v303, %v304
  %v306 = vrot.slane %v305, 1
  %v307 = vadd.f32 %v305, %v306
  %v308 = vrcp.pop 4.0
  %v309 = vmul.f32 %v307, %v308
  %v310 = vsub.f32 %v297, %v309
  %v311 = vmul.f32 %v310, %v310
  %v312 = vsel %vm300, %v311, 0.0
  %v313 = vrot.slane %v312, 4
  %v314 = vadd.f32 %v312, %v313
  %v315 = vrot.slane %v314, 2
  %v316 = vadd.f32 %v314, %v315
  %v317 = vrot.slane %v316, 1
  %v318 = vadd.f32 %v316, %v317
  %v319 = vmul.f32 %v318, %v308
  %v320 = vadd.f32 %v319, 1e-05
  %v321 = vrsqrt.pop %v320
  %v322 = vmul.f32 %v310, %v321
  %v323 = vld [vmem:[%s7] sm:$0x1]
  %v325 = vlaneseq
  %v326 = vshrl.u32 %v325, 7
  %v327 = vsub.s32 0, %v326
  %v328 = vrot.slane %v323, %v327
  %v330 = vmul.f32 %v322, %v328
  %v331 = vld [vmem:[%s8] sm:$0x1]
  %v333 = vlaneseq
  %v334 = vshrl.u32 %v333, 7
  %v335 = vsub.s32 0, %v334
  %v336 = vrot.slane %v331, %v335
  %v338 = vadd.f32 %v330, %v336
  %v339 = vmul.f32 %v338, %v338
  %v340 = vld [vmem:[%s9] sm:$0x3f]
  %vm341 = vcmask 48128
  %v343 = vsel %vm341, %v339, 0
  %vm345 = vcmask 1045504
  %v347 = vsel %vm345, %v340, 0
  %349 = vmatprep.subr.mxu0 0.0
  %350 = vmatpush1.msra.mxu0 %v347
  %351 = vmatprep.subr.mxu0 0.0
  %352 = vmatpush1.msra.mxu0 0.0
  %353 = vmatprep.subr.mxu0 0.0
  %354 = vmatpush1.msra.mxu0 0.0
  %355 = vmatprep.subr.mxu0 0.0
  %356 = vmatpush1.msra.mxu0 0.0
  %357 = vmatprep.subr.mxu0 0.0
  %358 = vmatpush1.msra.mxu0 0.0
  %359 = vmatprep.subr.mxu0 0.0
  %360 = vmatpush1.msra.mxu0 0.0
  %361 = vmatprep.subr.mxu0 0.0
  %362 = vmatpush1.msra.mxu0 0.0
  %363 = vmatprep.subr.mxu0 0.0
  %364 = vmatpush1.msra.mxu0 0.0
  %365 = vmatprep.subr.mxu0 0.0
  %366 = vmatpush1.msra.mxu0 0.0
  %367 = vmatprep.subr.mxu0 0.0
  %368 = vmatpush1.msra.mxu0 0.0
  %369 = vmatprep.subr.mxu0 0.0
  %370 = vmatpush1.msra.mxu0 0.0
  %371 = vmatprep.subr.mxu0 0.0
  %372 = vmatpush1.msra.mxu0 0.0
  %373 = vmatprep.subr.mxu0 0.0
  %374 = vmatpush1.msra.mxu0 0.0
  %375 = vmatprep.subr.mxu0 0.0
  %376 = vmatpush1.msra.mxu0 0.0
  %377 = vmatprep.subr.mxu0 0.0
  %378 = vmatpush1.msra.mxu0 0.0
  %379 = vmatprep.subr.mxu0 0.0
  %380 = vmatpush1.msra.mxu0 0.0
  %381 = vmatprep.subr.mxu0 0.0
  %382 = vmatpush1.msra.mxu0 0.0
  %383 = vmatprep.subr.mxu0 0.0
  %384 = vmatpush1.msra.mxu0 0.0
  %385 = vmatprep.subr.mxu0 0.0
  %386 = vmatpush1.msra.mxu0 0.0
  %387 = vmatprep.subr.mxu0 0.0
  %388 = vmatpush1.msra.mxu0 0.0
  %389 = vmatprep.subr.mxu0 0.0
  %390 = vmatpush1.msra.mxu0 0.0
  %391 = vmatprep.subr.mxu0 0.0
  %392 = vmatpush1.msra.mxu0 0.0
  %393 = vmatprep.subr.mxu0 0.0
  %394 = vmatpush1.msra.mxu0 0.0
  %395 = vmatprep.subr.mxu0 0.0
  %396 = vmatpush1.msra.mxu0 0.0
  %397 = vmatprep.subr.mxu0 0.0
  %398 = vmatpush1.msra.mxu0 0.0
  %399 = vmatprep.subr.mxu0 0.0
  %400 = vmatpush1.msra.mxu0 0.0
  %401 = vmatprep.subr.mxu0 0.0
  %402 = vmatpush1.msra.mxu0 0.0
  %403 = vmatprep.subr.mxu0 0.0
  %404 = vmatpush1.msra.mxu0 0.0
  %405 = vmatprep.subr.mxu0 0.0
  %406 = vmatpush1.msra.mxu0 0.0
  %407 = vmatprep.subr.mxu0 0.0
  %408 = vmatpush1.msra.mxu0 0.0
  %409 = vmatprep.subr.mxu0 0.0
  %410 = vmatpush1.msra.mxu0 0.0
  %411 = vmatprep.subr.mxu0 0.0
  %412 = vmatpush1.msra.mxu0 0.0
  %413 = vmatprep.mubr.f32.mxu0 0.0
  %414 = vmatmul.mubr.f32.gmra.mrb[0].mxu0 %v343
  %v415 = vpop.f32.mrb[0].mxu0
  %v416 = vadd.f32 0.0, %v415
  %v417 = vpop.f32.mrb[0].mxu0
  %418 = vdwg.mxu0
  %v419 = vmul.f32 %v416, -0.5
  %v420 = vld [vmem:[%s10] sm:$0x3f]
  %v422 = vsel %vm341, %v338, 0
  %v425 = vsel %vm345, %v420, 0
  %427 = vmatprep.subr.mxu0 0.0
  %428 = vmatpush1.msra.mxu0 %v425
  %429 = vmatprep.subr.mxu0 0.0
  %430 = vmatpush1.msra.mxu0 0.0
  %431 = vmatprep.subr.mxu0 0.0
  %432 = vmatpush1.msra.mxu0 0.0
  %433 = vmatprep.subr.mxu0 0.0
  %434 = vmatpush1.msra.mxu0 0.0
  %435 = vmatprep.subr.mxu0 0.0
  %436 = vmatpush1.msra.mxu0 0.0
  %437 = vmatprep.subr.mxu0 0.0
  %438 = vmatpush1.msra.mxu0 0.0
  %439 = vmatprep.subr.mxu0 0.0
  %440 = vmatpush1.msra.mxu0 0.0
  %441 = vmatprep.subr.mxu0 0.0
  %442 = vmatpush1.msra.mxu0 0.0
  %443 = vmatprep.subr.mxu0 0.0
  %444 = vmatpush1.msra.mxu0 0.0
  %445 = vmatprep.subr.mxu0 0.0
  %446 = vmatpush1.msra.mxu0 0.0
  %447 = vmatprep.subr.mxu0 0.0
  %448 = vmatpush1.msra.mxu0 0.0
  %449 = vmatprep.subr.mxu0 0.0
  %450 = vmatpush1.msra.mxu0 0.0
  %451 = vmatprep.subr.mxu0 0.0
  %452 = vmatpush1.msra.mxu0 0.0
  %453 = vmatprep.subr.mxu0 0.0
  %454 = vmatpush1.msra.mxu0 0.0
  %455 = vmatprep.subr.mxu0 0.0
  %456 = vmatpush1.msra.mxu0 0.0
  %457 = vmatprep.subr.mxu0 0.0
  %458 = vmatpush1.msra.mxu0 0.0
  %459 = vmatprep.subr.mxu0 0.0
  %460 = vmatpush1.msra.mxu0 0.0
  %461 = vmatprep.subr.mxu0 0.0
  %462 = vmatpush1.msra.mxu0 0.0
  %463 = vmatprep.subr.mxu0 0.0
  %464 = vmatpush1.msra.mxu0 0.0
  %465 = vmatprep.subr.mxu0 0.0
  %466 = vmatpush1.msra.mxu0 0.0
  %467 = vmatprep.subr.mxu0 0.0
  %468 = vmatpush1.msra.mxu0 0.0
  %469 = vmatprep.subr.mxu0 0.0
  %470 = vmatpush1.msra.mxu0 0.0
  %471 = vmatprep.subr.mxu0 0.0
  %472 = vmatpush1.msra.mxu0 0.0
  %473 = vmatprep.subr.mxu0 0.0
  %474 = vmatpush1.msra.mxu0 0.0
  %475 = vmatprep.subr.mxu0 0.0
  %476 = vmatpush1.msra.mxu0 0.0
  %477 = vmatprep.subr.mxu0 0.0
  %478 = vmatpush1.msra.mxu0 0.0
  %479 = vmatprep.subr.mxu0 0.0
  %480 = vmatpush1.msra.mxu0 0.0
  %481 = vmatprep.subr.mxu0 0.0
  %482 = vmatpush1.msra.mxu0 0.0
  %483 = vmatprep.subr.mxu0 0.0
  %484 = vmatpush1.msra.mxu0 0.0
  %485 = vmatprep.subr.mxu0 0.0
  %486 = vmatpush1.msra.mxu0 0.0
  %487 = vmatprep.subr.mxu0 0.0
  %488 = vmatpush1.msra.mxu0 0.0
  %489 = vmatprep.subr.mxu0 0.0
  %490 = vmatpush1.msra.mxu0 0.0
  %491 = vmatprep.mubr.f32.mxu0 0.0
  %492 = vmatmul.mubr.f32.gmra.mrb[0].mxu0 %v422
  %v493 = vpop.f32.mrb[0].mxu0
  %v494 = vadd.f32 0.0, %v493
  %v495 = vpop.f32.mrb[0].mxu0
  %496 = vdwg.mxu0
  %v497 = vadd.f32 %v419, %v494
  %v498 = vld [vmem:[%s11] sm:$0x1]
  %v500 = vlaneseq
  %v501 = vshrl.u32 %v500, 7
  %v502 = vsub.s32 0, %v501
  %v503 = vrot.slane %v498, %v502
  %v505 = vadd.f32 %v497, %v503
  %v506 = vmin.f32 %v505, 80.0
  %v507 = vld [vmem:[%s12] sm:$0x1]
  %v508 = vmul.f32 %v506, 1.442695
  %v509 = vpow.pop %v508
  %v511 = vlaneseq
  %v512 = vshrl.u32 %v511, 7
  %v513 = vsub.s32 0, %v512
  %v514 = vrot.slane %v507, %v513
  %v516 = vmul.f32 %v514, %v509
  %v517 = vadd.f32 %v516, 1.0
  %vm518 = vcmask 11264
  %519 = vst.msk [vmem:[%s13] sm:$0xf] %vm518, %v517
  // Predicated region
  $region54: #{attentive_fp_post_forward.3} parent=0 // pred_check
    _
  $region55: #{attentive_fp_post_forward.3} parent=0 // pred_check_branch
    %521 = sbr.rel (0) target = $region57
  $region56: #{attentive_fp_post_forward.3} parent=0 // pred_region
    _
  $region57: #{attentive_fp_post_forward.3} parent=0 // pred_fallthru
    _
  // Predicated region
  $region58: #{attentive_fp_post_forward.3} parent=0 // pred_check
    _
  $region59: #{attentive_fp_post_forward.3} parent=0 // pred_check_branch
    %523 = sbr.rel (0) target = $region61
  $region60: #{attentive_fp_post_forward.3} parent=0 // pred_region
    _
  $region61: #{attentive_fp_post_forward.3} parent=0 // pred_fallthru
    _

// kernel: attentive_fp_post_forward.2
$region0: #{attentive_fp_post_forward.2}
  #allocation0 [shape = 'u32[]', space=smem, size = 0x4, offset = 0x4, fixed_abs, tag = 'smem constant byte address 0x4 - core index']
  #allocation1 [shape = 'u32[144,128]{1,0:T(1,128)}', space=vmem, size = 0x12000, scoped, tag = 'internal scratch']
  %s0 = inlined_call_operand.vmem [shape: bf16[2048,9], index: 0, kind: input, shape index: {}]
  %s1 = inlined_call_operand.vmem [shape: s32[1,2048], index: 1, kind: input, shape index: {}]
  %s2 = inlined_call_operand.vmem [shape: s32[4,1], index: 2, kind: input, shape index: {}]
  %s3 = inlined_call_operand.vmem [shape: bf16[9,33], index: 3, kind: input, shape index: {}]
  %s4 = inlined_call_operand.vmem [shape: f32[1,33], index: 4, kind: input, shape index: {}]
  %s5 = inlined_call_operand.vmem [shape: f32[2,4,33], index: 5, kind: output, shape index: {}]
  %s6 = sld [smem:[#allocation0]]
  $region57: #{attentive_fp_post_forward.2} parent=0
    _
  %s8 = ssub.s32 1, %s6
  %s9 = scalar_select 0, %s8, %s6
  loop: start=0, step=1, limit=4
  $region2: #{attentive_fp_post_forward.2} parent=0 // loop_pre_header
    _
  $region3: #{attentive_fp_post_forward.2} parent=0 // loop_header
    %s11 = sphi 0, %s15
    %p12 = scmp.ge.s32.totalorder %s11, 4
    %s18 = sphi 0, %s30
    %s19 = sphi 0, %s26
    %s20 = sphi 0, %s18
    %s21 = sphi 0, %s19
    %s22 = sphi 0, %s20
    %s23 = sphi 0, %s21
    %s35 = sphi 0, %s37
    %s38 = sphi 0, %s35
    %s39 = sphi 0, %s38
    %s55 = sphi 0, %s39
    %s63 = sphi 0, %s65
    %s66 = sphi 0, %s63
    %s67 = sphi 0, %s66
    %s83 = sphi 0, %s67
    %s87 = sphi 0, %s87
    %s89 = sphi 0, %s87
    %s90 = sphi 0, %s89
    %s104 = sphi 0, %s90
    %s108 = sphi 0, %s108
    %s110 = sphi 0, %s108
    %s111 = sphi 0, %s110
    %s125 = sphi 0, %s111
    %s129 = sphi 0, %s129
    %s131 = sphi 0, %s129
    %s132 = sphi 0, %s131
    %s146 = sphi 0, %s132
    %s152 = sphi 0, %s154
    %s155 = sphi 0, %s152
    %s156 = sphi 0, %s155
    %s172 = sphi 0, %s156
  $region4: #{attentive_fp_post_forward.2} parent=0 // loop_header_branch
    %14 = sbr.rel (%p12) target = $region8
  $region5: #{attentive_fp_post_forward.2} parent=0 // loop_body
    %s16 = ssub.s32 %s11, 1
    %s17 = ssub.s32 %s11, 2
    %s24 = sadd.s32 1, %s19
    %p25 = scmp.ge.s32.totalorder %s24, 1
    %s26 = scalar_select %p25, 0, %s24
    %s27 = sadd.s32 1, %s18
    %s28 = scalar_select %p25, %s27, %s18
    %p29 = scmp.ge.s32.totalorder %s28, 2
    %s30 = scalar_select %p29, 0, %s28
    %s31 = sadd.s32 %s18, %s19
    %s32 = sadd.s32 %s30, %s26
    %s33 = ssub.s32 %s31, %s32
    %p34 = scmp.eq.s32.totalorder %s33, 0
    %s36 = sadd.s32 %s35, 1
    %s37 = scalar_select %p34, %s35, %s36
    %p40 = pneg %p34
    %p41 = scmp.eq.s32.totalorder %s11, 1
    %p42 = por %p40, %p41
    %p43 = scmp.ne.s32.totalorder %s35, %s38
    %p44 = scmp.eq.s32.totalorder %s11, 0
    %p45 = por %p43, %p44
    %p46 = scmp.ne.s32.totalorder %s35, %s38
    %p47 = scmp.eq.s32.totalorder %s16, 1
    %p48 = por %p46, %p47
    %p49 = scmp.ne.s32.totalorder %s38, %s39
    %p50 = scmp.eq.s32.totalorder %s16, 0
    %p51 = por %p49, %p50
    %p52 = scmp.ne.s32.totalorder %s38, %s39
    %p53 = scmp.eq.s32.totalorder %s17, 1
    %p54 = por %p52, %p53
    %p56 = scmp.ne.s32.totalorder %s39, %s55
    %p57 = scmp.eq.s32.totalorder %s17, 0
    %p58 = por %p56, %p57
    %s59 = sadd.s32 %s18, %s19
    %s60 = sadd.s32 %s30, %s26
    %s61 = ssub.s32 %s59, %s60
    %p62 = scmp.eq.s32.totalorder %s61, 0
    %s64 = sadd.s32 %s63, 1
    %s65 = scalar_select %p62, %s63, %s64
    %p68 = pneg %p62
    %p69 = scmp.eq.s32.totalorder %s11, 1
    %p70 = por %p68, %p69
    %p71 = scmp.ne.s32.totalorder %s63, %s66
    %p72 = scmp.eq.s32.totalorder %s11, 0
    %p73 = por %p71, %p72
    %p74 = scmp.ne.s32.totalorder %s63, %s66
    %p75 = scmp.eq.s32.totalorder %s16, 1
    %p76 = por %p74, %p75
    %p77 = scmp.ne.s32.totalorder %s66, %s67
    %p78 = scmp.eq.s32.totalorder %s16, 0
    %p79 = por %p77, %p78
    %p80 = scmp.ne.s32.totalorder %s66, %s67
    %p81 = scmp.eq.s32.totalorder %s17, 1
    %p82 = por %p80, %p81
    %p84 = scmp.ne.s32.totalorder %s67, %s83
    %p85 = scmp.eq.s32.totalorder %s17, 0
    %p86 = por %p84, %p85
    %s88 = sadd.s32 %s87, 1
    %p91 = scmp.eq.s32.totalorder %s11, 1
    %p92 = scmp.ne.s32.totalorder %s87, %s89
    %p93 = scmp.eq.s32.totalorder %s11, 0
    %p94 = por %p92, %p93
    %p95 = scmp.ne.s32.totalorder %s87, %s89
    %p96 = scmp.eq.s32.totalorder %s16, 1
    %p97 = por %p95, %p96
    %p98 = scmp.ne.s32.totalorder %s89, %s90
    %p99 = scmp.eq.s32.totalorder %s16, 0
    %p100 = por %p98, %p99
    %p101 = scmp.ne.s32.totalorder %s89, %s90
    %p102 = scmp.eq.s32.totalorder %s17, 1
    %p103 = por %p101, %p102
    %p105 = scmp.ne.s32.totalorder %s90, %s104
    %p106 = scmp.eq.s32.totalorder %s17, 0
    %p107 = por %p105, %p106
    %s109 = sadd.s32 %s108, 1
    %p112 = scmp.eq.s32.totalorder %s11, 1
    %p113 = scmp.ne.s32.totalorder %s108, %s110
    %p114 = scmp.eq.s32.totalorder %s11, 0
    %p115 = por %p113, %p114
    %p116 = scmp.ne.s32.totalorder %s108, %s110
    %p117 = scmp.eq.s32.totalorder %s16, 1
    %p118 = por %p116, %p117
    %p119 = scmp.ne.s32.totalorder %s110, %s111
    %p120 = scmp.eq.s32.totalorder %s16, 0
    %p121 = por %p119, %p120
    %p122 = scmp.ne.s32.totalorder %s110, %s111
    %p123 = scmp.eq.s32.totalorder %s17, 1
    %p124 = por %p122, %p123
    %p126 = scmp.ne.s32.totalorder %s111, %s125
    %p127 = scmp.eq.s32.totalorder %s17, 0
    %p128 = por %p126, %p127
    %s130 = sadd.s32 %s129, 1
    %p133 = scmp.eq.s32.totalorder %s11, 1
    %p134 = scmp.ne.s32.totalorder %s129, %s131
    %p135 = scmp.eq.s32.totalorder %s11, 0
    %p136 = por %p134, %p135
    %p137 = scmp.ne.s32.totalorder %s129, %s131
    %p138 = scmp.eq.s32.totalorder %s16, 1
    %p139 = por %p137, %p138
    %p140 = scmp.ne.s32.totalorder %s131, %s132
    %p141 = scmp.eq.s32.totalorder %s16, 0
    %p142 = por %p140, %p141
    %p143 = scmp.ne.s32.totalorder %s131, %s132
    %p144 = scmp.eq.s32.totalorder %s17, 1
    %p145 = por %p143, %p144
    %p147 = scmp.ne.s32.totalorder %s132, %s146
    %p148 = scmp.eq.s32.totalorder %s17, 0
    %p149 = por %p147, %p148
    %s150 = ssub.s32 %s18, %s30
    %p151 = scmp.eq.s32.totalorder %s150, 0
    %s153 = sadd.s32 %s152, 1
    %s154 = scalar_select %p151, %s152, %s153
    %p157 = pneg %p151
    %p158 = scmp.eq.s32.totalorder %s11, 1
    %p159 = por %p157, %p158
    %p160 = scmp.ne.s32.totalorder %s152, %s155
    %p161 = scmp.eq.s32.totalorder %s11, 0
    %p162 = por %p160, %p161
    %p163 = scmp.ne.s32.totalorder %s152, %s155
    %p164 = scmp.eq.s32.totalorder %s16, 1
    %p165 = por %p163, %p164
    %p166 = scmp.ne.s32.totalorder %s155, %s156
    %p167 = scmp.eq.s32.totalorder %s16, 0
    %p168 = por %p166, %p167
    %p169 = scmp.ne.s32.totalorder %s155, %s156
    %p170 = scmp.eq.s32.totalorder %s17, 1
    %p171 = por %p169, %p170
    %p173 = scmp.ne.s32.totalorder %s156, %s172
    %p174 = scmp.eq.s32.totalorder %s17, 0
    %p175 = por %p173, %p174
    %p176 = scmp.le.s32.totalorder 1, %s11
    %p177 = scmp.lt.s32.totalorder %s11, 3
    %p178 = pnand %p176, %p177
    %p179 = pneg %p178
    // Predicated region
    $region9: #{attentive_fp_post_forward.2} parent=5 // pred_check
      _
    $region10: #{attentive_fp_post_forward.2} parent=5 // pred_check_branch
      %181 = sbr.rel (%p178) target = $region12
    $region11: #{attentive_fp_post_forward.2} parent=5 // pred_region
      %s182 = ssub.s32 %s11, 1
      // Predicated region
      $region13: #{attentive_fp_post_forward.2} parent=11 // pred_check
        %p183 = pneg %p100
      $region14: #{attentive_fp_post_forward.2} parent=11 // pred_check_branch
        %185 = sbr.rel (%p183) target = $region16
      $region15: #{attentive_fp_post_forward.2} parent=11 // pred_region
        _
      $region16: #{attentive_fp_post_forward.2} parent=11 // pred_fallthru
        _
      // Predicated region
      $region17: #{attentive_fp_post_forward.2} parent=11 // pred_check
        %p186 = pneg %p121
      $region18: #{attentive_fp_post_forward.2} parent=11 // pred_check_branch
        %188 = sbr.rel (%p186) target = $region20
      $region19: #{attentive_fp_post_forward.2} parent=11 // pred_region
        _
      $region20: #{attentive_fp_post_forward.2} parent=11 // pred_fallthru
        _
      // Predicated region
      $region21: #{attentive_fp_post_forward.2} parent=11 // pred_check
        %p189 = pneg %p142
      $region22: #{attentive_fp_post_forward.2} parent=11 // pred_check_branch
        %191 = sbr.rel (%p189) target = $region24
      $region23: #{attentive_fp_post_forward.2} parent=11 // pred_region
        _
      $region24: #{attentive_fp_post_forward.2} parent=11 // pred_fallthru
        _
    $region12: #{attentive_fp_post_forward.2} parent=5 // pred_fallthru
      _
    %p192 = scmp.lt.s32.totalorder %s11, 2
    // Predicated region
    $region25: #{attentive_fp_post_forward.2} parent=5 // pred_check
      %p193 = pneg %p192
    $region26: #{attentive_fp_post_forward.2} parent=5 // pred_check_branch
      %195 = sbr.rel (%p193) target = $region28
    $region27: #{attentive_fp_post_forward.2} parent=5 // pred_region
      // Predicated region
      $region29: #{attentive_fp_post_forward.2} parent=27 // pred_check
        %p196 = pneg %p45
      $region30: #{attentive_fp_post_forward.2} parent=27 // pred_check_branch
        %198 = sbr.rel (%p196) target = $region32
      $region31: #{attentive_fp_post_forward.2} parent=27 // pred_region
        %s199 = sadd.s32 %s18, %s19
        %s200 = smul.u32 128, %s199
        %p201 = scmp.lt.s32.totalorder %s200, 255
        %s202 = scalar_select %p201, %s200, 255
        %s203 = smul.addr %s202, 4
        %s204 = scalar_lea.vmem %s0, %s203
        %s205 = sadd.s32 %s18, %s19
        %s206 = smul.u32 128, %s205
      $region32: #{attentive_fp_post_forward.2} parent=27 // pred_fallthru
        _
      // Predicated region
      $region33: #{attentive_fp_post_forward.2} parent=27 // pred_check
        %p207 = pneg %p73
      $region34: #{attentive_fp_post_forward.2} parent=27 // pred_check_branch
        %209 = sbr.rel (%p207) target = $region36
      $region35: #{attentive_fp_post_forward.2} parent=27 // pred_region
        %s210 = sadd.s32 %s18, %s19
        %s211 = smul.u32 8, %s210
        %p212 = scmp.lt.s32.totalorder %s211, 15
        %s213 = scalar_select %p212, %s211, 15
        %s214 = scalar_lea.vmem %s1, %s213
        %s215 = sadd.s32 %s18, %s19
        %s216 = smul.u32 8, %s215
      $region36: #{attentive_fp_post_forward.2} parent=27 // pred_fallthru
        _
    $region28: #{attentive_fp_post_forward.2} parent=5 // pred_fallthru
      _
    %p217 = scmp.le.s32.totalorder 1, %s11
    %p218 = scmp.lt.s32.totalorder %s11, 3
    %p219 = pnand %p217, %p218
    %p220 = pneg %p219
    // Predicated region
    $region37: #{attentive_fp_post_forward.2} parent=5 // pred_check
      _
    $region38: #{attentive_fp_post_forward.2} parent=5 // pred_check_branch
      %222 = sbr.rel (%p219) target = $region40
    $region39: #{attentive_fp_post_forward.2} parent=5 // pred_region
      %s223 = ssub.s32 %s11, 1
      %s224 = sadd.s32 %s20, %s21
      %s225 = smul.u32 128, %s224
      %p226 = scmp.lt.s32.totalorder %s225, 255
      %s227 = scalar_select %p226, %s225, 255
      %s228 = smul.addr %s227, 4
      %s229 = scalar_lea.vmem %s0, %s228
      %p230 = pneg %p51
      %p231 = pneg %p48
      %s232 = sadd.s32 %s20, %s21
      %s233 = smul.u32 8, %s232
      %p234 = scmp.lt.s32.totalorder %s233, 15
      %s235 = scalar_select %p234, %s233, 15
      %s236 = scalar_lea.vmem %s1, %s235
      %p237 = pneg %p79
      %p238 = pneg %p76
      %p239 = pneg %p100
      %p240 = pneg %p97
      %p241 = pneg %p121
      %p242 = pneg %p118
      %p243 = pneg %p142
      %p244 = pneg %p139
      %p245 = pneg %p168
      %p246 = pneg %p165
      %p247 = scmp.lt.s32.totalorder %s20, 1
      %s248 = scalar_select %p247, %s20, 1
      %s249 = smul.addr %s248, 4
      %s250 = scalar_lea.vmem %s5, %s249
      %s251 = sadd.s32 %s20, %s21
      %s252 = smul.u32 128, %s251
      %p253 = scmp.lt.s32.totalorder %s252, 255
      %s254 = scalar_select %p253, %s252, 255
      %s255 = smul.addr %s254, 4
      %s256 = scalar_lea.vmem %s0, %s255
      %s257 = sadd.s32 %s20, %s21
      %s258 = smul.u32 128, %s257
      %s259 = sadd.s32 %s20, %s21
      %s260 = smul.u32 8, %s259
      %p261 = scmp.lt.s32.totalorder %s260, 15
      %s262 = scalar_select %p261, %s260, 15
      %s263 = scalar_lea.vmem %s1, %s262
      %s264 = sadd.s32 %s20, %s21
      %s265 = smul.u32 8, %s264
      %p266 = scmp.lt.s32.totalorder %s20, 1
      %s267 = scalar_select %p266, %s20, 1
      %s268 = smul.addr %s267, 4
      %s269 = scalar_lea.vmem %s5, %s268
      %p271 = scmp.eq.s32.totalorder %s21, 0
      // Predicated region
      $region41: #{attentive_fp_post_forward.2} parent=39 // pred_check
        %p272 = pneg %p271
      $region42: #{attentive_fp_post_forward.2} parent=39 // pred_check_branch
        %274 = sbr.rel (%p272) target = $region44
      $region43: #{attentive_fp_post_forward.2} parent=39 // pred_region
        %vm275 = vcmask 265216
        %276 = vst.msk [vmem:[%s269] sm:$0xf] %vm275, 0.0
      $region44: #{attentive_fp_post_forward.2} parent=39 // pred_fallthru
        _
      %v277 = vld [vmem:[%s256] sm:$0xf]
      %v278 = vld [vmem:[%s256 + $0x4] sm:$0xf]
      %v279 = vld [vmem:[%s256 + $0x8] sm:$0xf]
      %v280 = vld [vmem:[%s256 + $0xc] sm:$0xf]
      %v281 = vld [vmem:[%s256 + $0x10] sm:$0xf]
      %v282 = vld [vmem:[%s256 + $0x14] sm:$0xf]
      %v283 = vld [vmem:[%s256 + $0x18] sm:$0xf]
      %v284 = vld [vmem:[%s256 + $0x1c] sm:$0xf]
      %v285 = vld [vmem:[%s256 + $0x20] sm:$0xf]
      %v286 = vld [vmem:[%s256 + $0x24] sm:$0xf]
      %v287 = vld [vmem:[%s256 + $0x28] sm:$0xf]
      %v288 = vld [vmem:[%s256 + $0x2c] sm:$0xf]
      %v289 = vld [vmem:[%s256 + $0x30] sm:$0xf]
      %v290 = vld [vmem:[%s256 + $0x34] sm:$0xf]
      %v291 = vld [vmem:[%s256 + $0x38] sm:$0xf]
      %v292 = vld [vmem:[%s256 + $0x3c] sm:$0xf]
      %v293 = vld [vmem:[%s256 + $0x40] sm:$0xf]
      %v294 = vld [vmem:[%s256 + $0x44] sm:$0xf]
      %v295 = vld [vmem:[%s256 + $0x48] sm:$0xf]
      %v296 = vld [vmem:[%s256 + $0x4c] sm:$0xf]
      %v297 = vld [vmem:[%s256 + $0x50] sm:$0xf]
      %v298 = vld [vmem:[%s256 + $0x54] sm:$0xf]
      %v299 = vld [vmem:[%s256 + $0x58] sm:$0xf]
      %v300 = vld [vmem:[%s256 + $0x5c] sm:$0xf]
      %v301 = vld [vmem:[%s256 + $0x60] sm:$0xf]
      %v302 = vld [vmem:[%s256 + $0x64] sm:$0xf]
      %v303 = vld [vmem:[%s256 + $0x68] sm:$0xf]
      %v304 = vld [vmem:[%s256 + $0x6c] sm:$0xf]
      %v305 = vld [vmem:[%s256 + $0x70] sm:$0xf]
      %v306 = vld [vmem:[%s256 + $0x74] sm:$0xf]
      %v307 = vld [vmem:[%s256 + $0x78] sm:$0xf]
      %v308 = vld [vmem:[%s256 + $0x7c] sm:$0xf]
      %v309 = vld [vmem:[%s256 + $0x80] sm:$0xf]
      %v310 = vld [vmem:[%s256 + $0x84] sm:$0xf]
      %v311 = vld [vmem:[%s256 + $0x88] sm:$0xf]
      %v312 = vld [vmem:[%s256 + $0x8c] sm:$0xf]
      %v313 = vld [vmem:[%s256 + $0x90] sm:$0xf]
      %v314 = vld [vmem:[%s256 + $0x94] sm:$0xf]
      %v315 = vld [vmem:[%s256 + $0x98] sm:$0xf]
      %v316 = vld [vmem:[%s256 + $0x9c] sm:$0xf]
      %v317 = vld [vmem:[%s256 + $0xa0] sm:$0xf]
      %v318 = vld [vmem:[%s256 + $0xa4] sm:$0xf]
      %v319 = vld [vmem:[%s256 + $0xa8] sm:$0xf]
      %v320 = vld [vmem:[%s256 + $0xac] sm:$0xf]
      %v321 = vld [vmem:[%s256 + $0xb0] sm:$0xf]
      %v322 = vld [vmem:[%s256 + $0xb4] sm:$0xf]
      %v323 = vld [vmem:[%s256 + $0xb8] sm:$0xf]
      %v324 = vld [vmem:[%s256 + $0xbc] sm:$0xf]
      %v325 = vld [vmem:[%s256 + $0xc0] sm:$0xf]
      %v326 = vld [vmem:[%s256 + $0xc4] sm:$0xf]
      %v327 = vld [vmem:[%s256 + $0xc8] sm:$0xf]
      %v328 = vld [vmem:[%s256 + $0xcc] sm:$0xf]
      %v329 = vld [vmem:[%s256 + $0xd0] sm:$0xf]
      %v330 = vld [vmem:[%s256 + $0xd4] sm:$0xf]
      %v331 = vld [vmem:[%s256 + $0xd8] sm:$0xf]
      %v332 = vld [vmem:[%s256 + $0xdc] sm:$0xf]
      %v333 = vld [vmem:[%s256 + $0xe0] sm:$0xf]
      %v334 = vld [vmem:[%s256 + $0xe4] sm:$0xf]
      %v335 = vld [vmem:[%s256 + $0xe8] sm:$0xf]
      %v336 = vld [vmem:[%s256 + $0xec] sm:$0xf]
      %v337 = vld [vmem:[%s256 + $0xf0] sm:$0xf]
      %v338 = vld [vmem:[%s256 + $0xf4] sm:$0xf]
      %v339 = vld [vmem:[%s256 + $0xf8] sm:$0xf]
      %v340 = vld [vmem:[%s256 + $0xfc] sm:$0xf]
      %v341 = vld [vmem:[%s256 + $0x100] sm:$0xf]
      %v342 = vld [vmem:[%s256 + $0x104] sm:$0xf]
      %v343 = vld [vmem:[%s256 + $0x108] sm:$0xf]
      %v344 = vld [vmem:[%s256 + $0x10c] sm:$0xf]
      %v345 = vld [vmem:[%s256 + $0x110] sm:$0xf]
      %v346 = vld [vmem:[%s256 + $0x114] sm:$0xf]
      %v347 = vld [vmem:[%s256 + $0x118] sm:$0xf]
      %v348 = vld [vmem:[%s256 + $0x11c] sm:$0xf]
      %v349 = vld [vmem:[%s256 + $0x120] sm:$0xf]
      %v350 = vld [vmem:[%s256 + $0x124] sm:$0xf]
      %v351 = vld [vmem:[%s256 + $0x128] sm:$0xf]
      %v352 = vld [vmem:[%s256 + $0x12c] sm:$0xf]
      %v353 = vld [vmem:[%s256 + $0x130] sm:$0xf]
      %v354 = vld [vmem:[%s256 + $0x134] sm:$0xf]
      %v355 = vld [vmem:[%s256 + $0x138] sm:$0xf]
      %v356 = vld [vmem:[%s256 + $0x13c] sm:$0xf]
      %v357 = vld [vmem:[%s256 + $0x140] sm:$0xf]
      %v358 = vld [vmem:[%s256 + $0x144] sm:$0xf]
      %v359 = vld [vmem:[%s256 + $0x148] sm:$0xf]
      %v360 = vld [vmem:[%s256 + $0x14c] sm:$0xf]
      %v361 = vld [vmem:[%s256 + $0x150] sm:$0xf]
      %v362 = vld [vmem:[%s256 + $0x154] sm:$0xf]
      %v363 = vld [vmem:[%s256 + $0x158] sm:$0xf]
      %v364 = vld [vmem:[%s256 + $0x15c] sm:$0xf]
      %v365 = vld [vmem:[%s256 + $0x160] sm:$0xf]
      %v366 = vld [vmem:[%s256 + $0x164] sm:$0xf]
      %v367 = vld [vmem:[%s256 + $0x168] sm:$0xf]
      %v368 = vld [vmem:[%s256 + $0x16c] sm:$0xf]
      %v369 = vld [vmem:[%s256 + $0x170] sm:$0xf]
      %v370 = vld [vmem:[%s256 + $0x174] sm:$0xf]
      %v371 = vld [vmem:[%s256 + $0x178] sm:$0xf]
      %v372 = vld [vmem:[%s256 + $0x17c] sm:$0xf]
      %v373 = vld [vmem:[%s256 + $0x180] sm:$0xf]
      %v374 = vld [vmem:[%s256 + $0x184] sm:$0xf]
      %v375 = vld [vmem:[%s256 + $0x188] sm:$0xf]
      %v376 = vld [vmem:[%s256 + $0x18c] sm:$0xf]
      %v377 = vld [vmem:[%s256 + $0x190] sm:$0xf]
      %v378 = vld [vmem:[%s256 + $0x194] sm:$0xf]
      %v379 = vld [vmem:[%s256 + $0x198] sm:$0xf]
      %v380 = vld [vmem:[%s256 + $0x19c] sm:$0xf]
      %v381 = vld [vmem:[%s256 + $0x1a0] sm:$0xf]
      %v382 = vld [vmem:[%s256 + $0x1a4] sm:$0xf]
      %v383 = vld [vmem:[%s256 + $0x1a8] sm:$0xf]
      %v384 = vld [vmem:[%s256 + $0x1ac] sm:$0xf]
      %v385 = vld [vmem:[%s256 + $0x1b0] sm:$0xf]
      %v386 = vld [vmem:[%s256 + $0x1b4] sm:$0xf]
      %v387 = vld [vmem:[%s256 + $0x1b8] sm:$0xf]
      %v388 = vld [vmem:[%s256 + $0x1bc] sm:$0xf]
      %v389 = vld [vmem:[%s256 + $0x1c0] sm:$0xf]
      %v390 = vld [vmem:[%s256 + $0x1c4] sm:$0xf]
      %v391 = vld [vmem:[%s256 + $0x1c8] sm:$0xf]
      %v392 = vld [vmem:[%s256 + $0x1cc] sm:$0xf]
      %v393 = vld [vmem:[%s256 + $0x1d0] sm:$0xf]
      %v394 = vld [vmem:[%s256 + $0x1d4] sm:$0xf]
      %v395 = vld [vmem:[%s256 + $0x1d8] sm:$0xf]
      %v396 = vld [vmem:[%s256 + $0x1dc] sm:$0xf]
      %v397 = vld [vmem:[%s256 + $0x1e0] sm:$0xf]
      %v398 = vld [vmem:[%s256 + $0x1e4] sm:$0xf]
      %v399 = vld [vmem:[%s256 + $0x1e8] sm:$0xf]
      %v400 = vld [vmem:[%s256 + $0x1ec] sm:$0xf]
      %v401 = vld [vmem:[%s256 + $0x1f0] sm:$0xf]
      %v402 = vld [vmem:[%s256 + $0x1f4] sm:$0xf]
      %v403 = vld [vmem:[%s256 + $0x1f8] sm:$0xf]
      %v404 = vld [vmem:[%s256 + $0x1fc] sm:$0xf]
      %v405 = vld [vmem:[%s3] sm:$0xf]
      %v406 = vld [vmem:[%s3 + $0x4] sm:$0x1]
      %v407 = vld [vmem:[%s4] sm:$0x1]
      %v409 = vlaneseq
      %v410 = vshrl.u32 %v409, 7
      %v411 = vsub.s32 0, %v410
      %v412 = vrot.slane %v407, %v411
      %v542 = vunpack.c.l.b16 %v277
      %v543 = vunpack.c.l.b16 %v278
      %v544 = vunpack.c.l.b16 %v279
      %v545 = vunpack.c.l.b16 %v280
      %v546 = vunpack.c.l.b16 %v281
      %v547 = vunpack.c.l.b16 %v282
      %v548 = vunpack.c.l.b16 %v283
      %v549 = vunpack.c.l.b16 %v284
      %v550 = vunpack.c.l.b16 %v285
      %v551 = vunpack.c.l.b16 %v286
      %v552 = vunpack.c.l.b16 %v287
      %v553 = vunpack.c.l.b16 %v288
      %v554 = vunpack.c.l.b16 %v289
      %v555 = vunpack.c.l.b16 %v290
      %v556 = vunpack.c.l.b16 %v291
      %v557 = vunpack.c.l.b16 %v292
      %v558 = vunpack.c.l.b16 %v293
      %v559 = vunpack.c.l.b16 %v294
      %v560 = vunpack.c.l.b16 %v295
      %v561 = vunpack.c.l.b16 %v296
      %v562 = vunpack.c.l.b16 %v297
      %v563 = vunpack.c.l.b16 %v298
      %v564 = vunpack.c.l.b16 %v299
      %v565 = vunpack.c.l.b16 %v300
      %v566 = vunpack.c.l.b16 %v301
      %v567 = vunpack.c.l.b16 %v302
      %v568 = vunpack.c.l.b16 %v303
      %v569 = vunpack.c.l.b16 %v304
      %v570 = vunpack.c.l.b16 %v305
      %v571 = vunpack.c.l.b16 %v306
      %v572 = vunpack.c.l.b16 %v307
      %v573 = vunpack.c.l.b16 %v308
      %v574 = vunpack.c.l.b16 %v309
      %v575 = vunpack.c.l.b16 %v310
      %v576 = vunpack.c.l.b16 %v311
      %v577 = vunpack.c.l.b16 %v312
      %v578 = vunpack.c.l.b16 %v313
      %v579 = vunpack.c.l.b16 %v314
      %v580 = vunpack.c.l.b16 %v315
      %v581 = vunpack.c.l.b16 %v316
      %v582 = vunpack.c.l.b16 %v317
      %v583 = vunpack.c.l.b16 %v318
      %v584 = vunpack.c.l.b16 %v319
      %v585 = vunpack.c.l.b16 %v320
      %v586 = vunpack.c.l.b16 %v321
      %v587 = vunpack.c.l.b16 %v322
      %v588 = vunpack.c.l.b16 %v323
      %v589 = vunpack.c.l.b16 %v324
      %v590 = vunpack.c.l.b16 %v325
      %v591 = vunpack.c.l.b16 %v326
      %v592 = vunpack.c.l.b16 %v327
      %v593 = vunpack.c.l.b16 %v328
      %v594 = vunpack.c.l.b16 %v329
      %v595 = vunpack.c.l.b16 %v330
      %v596 = vunpack.c.l.b16 %v331
      %v597 = vunpack.c.l.b16 %v332
      %v598 = vunpack.c.l.b16 %v333
      %v599 = vunpack.c.l.b16 %v334
      %v600 = vunpack.c.l.b16 %v335
      %v601 = vunpack.c.l.b16 %v336
      %v602 = vunpack.c.l.b16 %v337
      %v603 = vunpack.c.l.b16 %v338
      %v604 = vunpack.c.l.b16 %v339
      %v605 = vunpack.c.l.b16 %v340
      %v606 = vunpack.c.l.b16 %v341
      %v607 = vunpack.c.l.b16 %v342
      %v608 = vunpack.c.l.b16 %v343
      %v609 = vunpack.c.l.b16 %v344
      %v610 = vunpack.c.l.b16 %v345
      %v611 = vunpack.c.l.b16 %v346
      %v612 = vunpack.c.l.b16 %v347
      %v613 = vunpack.c.l.b16 %v348
      %v614 = vunpack.c.l.b16 %v349
      %v615 = vunpack.c.l.b16 %v350
      %v616 = vunpack.c.l.b16 %v351
      %v617 = vunpack.c.l.b16 %v352
      %v618 = vunpack.c.l.b16 %v353
      %v619 = vunpack.c.l.b16 %v354
      %v620 = vunpack.c.l.b16 %v355
      %v621 = vunpack.c.l.b16 %v356
      %v622 = vunpack.c.l.b16 %v357
      %v623 = vunpack.c.l.b16 %v358
      %v624 = vunpack.c.l.b16 %v359
      %v625 = vunpack.c.l.b16 %v360
      %v626 = vunpack.c.l.b16 %v361
      %v627 = vunpack.c.l.b16 %v362
      %v628 = vunpack.c.l.b16 %v363
      %v629 = vunpack.c.l.b16 %v364
      %v630 = vunpack.c.l.b16 %v365
      %v631 = vunpack.c.l.b16 %v366
      %v632 = vunpack.c.l.b16 %v367
      %v633 = vunpack.c.l.b16 %v368
      %v634 = vunpack.c.l.b16 %v369
      %v635 = vunpack.c.l.b16 %v370
      %v636 = vunpack.c.l.b16 %v371
      %v637 = vunpack.c.l.b16 %v372
      %v638 = vunpack.c.l.b16 %v373
      %v639 = vunpack.c.l.b16 %v374
      %v640 = vunpack.c.l.b16 %v375
      %v641 = vunpack.c.l.b16 %v376
      %v642 = vunpack.c.l.b16 %v377
      %v643 = vunpack.c.l.b16 %v378
      %v644 = vunpack.c.l.b16 %v379
      %v645 = vunpack.c.l.b16 %v380
      %v646 = vunpack.c.l.b16 %v381
      %v647 = vunpack.c.l.b16 %v382
      %v648 = vunpack.c.l.b16 %v383
      %v649 = vunpack.c.l.b16 %v384
      %v650 = vunpack.c.l.b16 %v385
      %v651 = vunpack.c.l.b16 %v386
      %v652 = vunpack.c.l.b16 %v387
      %v653 = vunpack.c.l.b16 %v388
      %v654 = vunpack.c.l.b16 %v389
      %v655 = vunpack.c.l.b16 %v390
      %v656 = vunpack.c.l.b16 %v391
      %v657 = vunpack.c.l.b16 %v392
      %v658 = vunpack.c.l.b16 %v393
      %v659 = vunpack.c.l.b16 %v394
      %v660 = vunpack.c.l.b16 %v395
      %v661 = vunpack.c.l.b16 %v396
      %v662 = vunpack.c.l.b16 %v397
      %v663 = vunpack.c.l.b16 %v398
      %v664 = vunpack.c.l.b16 %v399
      %v665 = vunpack.c.l.b16 %v400
      %v666 = vunpack.c.l.b16 %v401
      %v667 = vunpack.c.l.b16 %v402
      %v668 = vunpack.c.l.b16 %v403
      %v669 = vunpack.c.l.b16 %v404
      %v670 = vpack.c.b16 %v543, %v542
      %v671 = vpack.c.b16 %v545, %v544
      %v672 = vpack.c.b16 %v547, %v546
      %v673 = vpack.c.b16 %v549, %v548
      %v674 = vpack.c.b16 %v551, %v550
      %v675 = vpack.c.b16 %v553, %v552
      %v676 = vpack.c.b16 %v555, %v554
      %v677 = vpack.c.b16 %v557, %v556
      %v678 = vpack.c.b16 %v559, %v558
      %v679 = vpack.c.b16 %v561, %v560
      %v680 = vpack.c.b16 %v563, %v562
      %v681 = vpack.c.b16 %v565, %v564
      %v682 = vpack.c.b16 %v567, %v566
      %v683 = vpack.c.b16 %v569, %v568
      %v684 = vpack.c.b16 %v571, %v570
      %v685 = vpack.c.b16 %v573, %v572
      %v686 = vpack.c.b16 %v575, %v574
      %v687 = vpack.c.b16 %v577, %v576
      %v688 = vpack.c.b16 %v579, %v578
      %v689 = vpack.c.b16 %v581, %v580
      %v690 = vpack.c.b16 %v583, %v582
      %v691 = vpack.c.b16 %v585, %v584
      %v692 = vpack.c.b16 %v587, %v586
      %v693 = vpack.c.b16 %v589, %v588
      %v694 = vpack.c.b16 %v591, %v590
      %v695 = vpack.c.b16 %v593, %v592
      %v696 = vpack.c.b16 %v595, %v594
      %v697 = vpack.c.b16 %v597, %v596
      %v698 = vpack.c.b16 %v599, %v598
      %v699 = vpack.c.b16 %v601, %v600
      %v700 = vpack.c.b16 %v603, %v602
      %v701 = vpack.c.b16 %v605, %v604
      %v702 = vpack.c.b16 %v607, %v606
      %v703 = vpack.c.b16 %v609, %v608
      %v704 = vpack.c.b16 %v611, %v610
      %v705 = vpack.c.b16 %v613, %v612
      %v706 = vpack.c.b16 %v615, %v614
      %v707 = vpack.c.b16 %v617, %v616
      %v708 = vpack.c.b16 %v619, %v618
      %v709 = vpack.c.b16 %v621, %v620
      %v710 = vpack.c.b16 %v623, %v622
      %v711 = vpack.c.b16 %v625, %v624
      %v712 = vpack.c.b16 %v627, %v626
      %v713 = vpack.c.b16 %v629, %v628
      %v714 = vpack.c.b16 %v631, %v630
      %v715 = vpack.c.b16 %v633, %v632
      %v716 = vpack.c.b16 %v635, %v634
      %v717 = vpack.c.b16 %v637, %v636
      %v718 = vpack.c.b16 %v639, %v638
      %v719 = vpack.c.b16 %v641, %v640
      %v720 = vpack.c.b16 %v643, %v642
      %v721 = vpack.c.b16 %v645, %v644
      %v722 = vpack.c.b16 %v647, %v646
      %v723 = vpack.c.b16 %v649, %v648
      %v724 = vpack.c.b16 %v651, %v650
      %v725 = vpack.c.b16 %v653, %v652
      %v726 = vpack.c.b16 %v655, %v654
      %v727 = vpack.c.b16 %v657, %v656
      %v728 = vpack.c.b16 %v659, %v658
      %v729 = vpack.c.b16 %v661, %v660
      %v730 = vpack.c.b16 %v663, %v662
      %v731 = vpack.c.b16 %v665, %v664
      %v732 = vpack.c.b16 %v667, %v666
      %v733 = vpack.c.b16 %v669, %v668
      %v736 = vunpack.c.l.b16 %v405
      %v737 = vunpack.c.l.b16 %v406
      %v738 = vpack.c.b16 %v737, %v736
      %vm739 = vcmask 72704
      %v741 = vsel %vm739, %v670, 0
      %v744 = vsel %vm739, %v671, 0
      %v747 = vsel %vm739, %v672, 0
      %v750 = vsel %vm739, %v673, 0
      %v753 = vsel %vm739, %v674, 0
      %v756 = vsel %vm739, %v675, 0
      %v759 = vsel %vm739, %v676, 0
      %v762 = vsel %vm739, %v677, 0
      %v765 = vsel %vm739, %v678, 0
      %v768 = vsel %vm739, %v679, 0
      %v771 = vsel %vm739, %v680, 0
      %v774 = vsel %vm739, %v681, 0
      %v777 = vsel %vm739, %v682, 0
      %v780 = vsel %vm739, %v683, 0
      %v783 = vsel %vm739, %v684, 0
      %v786 = vsel %vm739, %v685, 0
      %v789 = vsel %vm739, %v686, 0
      %v792 = vsel %vm739, %v687, 0
      %v795 = vsel %vm739, %v688, 0
      %v798 = vsel %vm739, %v689, 0
      %v801 = vsel %vm739, %v690, 0
      %v804 = vsel %vm739, %v691, 0
      %v807 = vsel %vm739, %v692, 0
      %v810 = vsel %vm739, %v693, 0
      %v813 = vsel %vm739, %v694, 0
      %v816 = vsel %vm739, %v695, 0
      %v819 = vsel %vm739, %v696, 0
      %v822 = vsel %vm739, %v697, 0
      %v825 = vsel %vm739, %v698, 0
      %v828 = vsel %vm739, %v699, 0
      %v831 = vsel %vm739, %v700, 0
      %v834 = vsel %vm739, %v701, 0
      %v837 = vsel %vm739, %v702, 0
      %v840 = vsel %vm739, %v703, 0
      %v843 = vsel %vm739, %v704, 0
      %v846 = vsel %vm739, %v705, 0
      %v849 = vsel %vm739, %v706, 0
      %v852 = vsel %vm739, %v707, 0
      %v855 = vsel %vm739, %v708, 0
      %v858 = vsel %vm739, %v709, 0
      %v861 = vsel %vm739, %v710, 0
      %v864 = vsel %vm739, %v711, 0
      %v867 = vsel %vm739, %v712, 0
      %v870 = vsel %vm739, %v713, 0
      %v873 = vsel %vm739, %v714, 0
      %v876 = vsel %vm739, %v715, 0
      %v879 = vsel %vm739, %v716, 0
      %v882 = vsel %vm739, %v717, 0
      %v885 = vsel %vm739, %v718, 0
      %v888 = vsel %vm739, %v719, 0
      %v891 = vsel %vm739, %v720, 0
      %v894 = vsel %vm739, %v721, 0
      %v897 = vsel %vm739, %v722, 0
      %v900 = vsel %vm739, %v723, 0
      %v903 = vsel %vm739, %v724, 0
      %v906 = vsel %vm739, %v725, 0
      %v909 = vsel %vm739, %v726, 0
      %v912 = vsel %vm739, %v727, 0
      %v915 = vsel %vm739, %v728, 0
      %v918 = vsel %vm739, %v729, 0
      %v921 = vsel %vm739, %v730, 0
      %v924 = vsel %vm739, %v731, 0
      %v927 = vsel %vm739, %v732, 0
      %v930 = vsel %vm739, %v733, 0
      %vm932 = vcmask 1043456
      %vm933 = vcmask 1044480
      %v934 = vsel %vm932, 4294967295, 65535
      %v935 = vsel %vm933, %v934, 0
      %v937 = vand.u32 %v738, %v935
      %939 = vmatprep.subr.bf16.mxu0 0
      %940 = vmatpush1.bf16.msra.mxu0 %v937
      %941 = vmatprep.subr.bf16.mxu0 0
      %942 = vmatpush1.bf16.msra.mxu0 0
      %943 = vmatprep.subr.bf16.mxu0 0
      %944 = vmatpush1.bf16.msra.mxu0 0
      %945 = vmatprep.subr.bf16.mxu0 0
      %946 = vmatpush1.bf16.msra.mxu0 0
      %947 = vmatprep.subr.bf16.mxu0 0
      %948 = vmatpush1.bf16.msra.mxu0 0
      %949 = vmatprep.subr.bf16.mxu0 0
      %950 = vmatpush1.bf16.msra.mxu0 0
      %951 = vmatprep.subr.bf16.mxu0 0
      %952 = vmatpush1.bf16.msra.mxu0 0
      %953 = vmatprep.subr.bf16.mxu0 0
      %954 = vmatpush1.bf16.msra.mxu0 0
      %955 = vmatprep.subr.bf16.mxu0 0
      %956 = vmatpush1.bf16.msra.mxu0 0
      %957 = vmatprep.subr.bf16.mxu0 0
      %958 = vmatpush1.bf16.msra.mxu0 0
      %959 = vmatprep.subr.bf16.mxu0 0
      %960 = vmatpush1.bf16.msra.mxu0 0
      %961 = vmatprep.subr.bf16.mxu0 0
      %962 = vmatpush1.bf16.msra.mxu0 0
      %963 = vmatprep.subr.bf16.mxu0 0
      %964 = vmatpush1.bf16.msra.mxu0 0
      %965 = vmatprep.subr.bf16.mxu0 0
      %966 = vmatpush1.bf16.msra.mxu0 0
      %967 = vmatprep.subr.bf16.mxu0 0
      %968 = vmatpush1.bf16.msra.mxu0 0
      %969 = vmatprep.subr.bf16.mxu0 0
      %970 = vmatpush1.bf16.msra.mxu0 0
      %971 = vmatprep.mubr.bf16.mxu0 0
      %972 = vmatmul.mubr.bf16.gmra.mrb[0].mxu0 %v741
      %v973 = vpop.f32.mrb[0].mxu0
      %v974 = vadd.f32 %v412, %v973
      %v975 = vpop.f32.mrb[0].mxu0
      %v976 = vpop.f32.mrb[0].mxu0
      %v977 = vadd.f32 %v412, %v976
      %v978 = vpop.f32.mrb[0].mxu0
      %979 = vmatprep.mubr.bf16.mxu0 0
      %980 = vmatmul.mubr.bf16.gmra.mrb[0].mxu0 %v744
      %v981 = vpop.f32.mrb[0].mxu0
      %v982 = vadd.f32 %v412, %v981
      %v983 = vpop.f32.mrb[0].mxu0
      %v984 = vpop.f32.mrb[0].mxu0
      %v985 = vadd.f32 %v412, %v984
      %v986 = vpop.f32.mrb[0].mxu0
      %987 = vmatprep.mubr.bf16.mxu0 0
      %988 = vmatmul.mubr.bf16.gmra.mrb[0].mxu0 %v747
      %v989 = vpop.f32.mrb[0].mxu0
      %v990 = vadd.f32 %v412, %v989
      %v991 = vpop.f32.mrb[0].mxu0
      %v992 = vpop.f32.mrb[0].mxu0
      %v993 = vadd.f32 %v412, %v992
      %v994 = vpop.f32.mrb[0].mxu0
      %995 = vmatprep.mubr.bf16.mxu0 0
      %996 = vmatmul.mubr.bf16.gmra.mrb[0].mxu0 %v750
      %v997 = vpop.f32.mrb[0].mxu0
      %v998 = vadd.f32 %v412, %v997
      %v999 = vpop.f32.mrb[0].mxu0
      %v1000 = vpop.f32.mrb[0].mxu0
      %v1001 = vadd.f32 %v412, %v1000
      %v1002 = vpop.f32.mrb[0].mxu0
      %1003 = vmatprep.mubr.bf16.mxu0 0
      %1004 = vmatmul.mubr.bf16.gmra.mrb[0].mxu0 %v753
      %v1005 = vpop.f32.mrb[0].mxu0
      %v1006 = vadd.f32 %v412, %v1005
      %v1007 = vpop.f32.mrb[0].mxu0
      %v1008 = vpop.f32.mrb[0].mxu0
      %v1009 = vadd.f32 %v412, %v1008
      %v1010 = vpop.f32.mrb[0].mxu0
      %1011 = vmatprep.mubr.bf16.mxu0 0
      %1012 = vmatmul.mubr.bf16.gmra.mrb[0].mxu0 %v756
      %v1013 = vpop.f32.mrb[0].mxu0
      %v1014 = vadd.f32 %v412, %v1013
      %v1015 = vpop.f32.mrb[0].mxu0
      %v1016 = vpop.f32.mrb[0].mxu0
      %v1017 = vadd.f32 %v412, %v1016
      %v1018 = vpop.f32.mrb[0].mxu0
      %1019 = vmatprep.mubr.bf16.mxu0 0
      %1020 = vmatmul.mubr.bf16.gmra.mrb[0].mxu0 %v759
      %v1021 = vpop.f32.mrb[0].mxu0
      %v1022 = vadd.f32 %v412, %v1021
      %v1023 = vpop.f32.mrb[0].mxu0
      %v1024 = vpop.f32.mrb[0].mxu0
      %v1025 = vadd.f32 %v412, %v1024
      %v1026 = vpop.f32.mrb[0].mxu0
      %1027 = vmatprep.mubr.bf16.mxu0 0
      %1028 = vmatmul.mubr.bf16.gmra.mrb[0].mxu0 %v762
      %v1029 = vpop.f32.mrb[0].mxu0
      %v1030 = vadd.f32 %v412, %v1029
      %v1031 = vpop.f32.mrb[0].mxu0
      %v1032 = vpop.f32.mrb[0].mxu0
      %v1033 = vadd.f32 %v412, %v1032
      %v1034 = vpop.f32.mrb[0].mxu0
      %1035 = vmatprep.mubr.bf16.mxu0 0
      %1036 = vmatmul.mubr.bf16.gmra.mrb[0].mxu0 %v765
      %v1037 = vpop.f32.mrb[0].mxu0
      %v1038 = vadd.f32 %v412, %v1037
      %v1039 = vpop.f32.mrb[0].mxu0
      %v1040 = vpop.f32.mrb[0].mxu0
      %v1041 = vadd.f32 %v412, %v1040
      %v1042 = vpop.f32.mrb[0].mxu0
      %1043 = vmatprep.mubr.bf16.mxu0 0
      %1044 = vmatmul.mubr.bf16.gmra.mrb[0].mxu0 %v768
      %v1045 = vpop.f32.mrb[0].mxu0
      %v1046 = vadd.f32 %v412, %v1045
      %v1047 = vpop.f32.mrb[0].mxu0
      %v1048 = vpop.f32.mrb[0].mxu0
      %v1049 = vadd.f32 %v412, %v1048
      %v1050 = vpop.f32.mrb[0].mxu0
      %1051 = vmatprep.mubr.bf16.mxu0 0
      %1052 = vmatmul.mubr.bf16.gmra.mrb[0].mxu0 %v771
      %v1053 = vpop.f32.mrb[0].mxu0
      %v1054 = vadd.f32 %v412, %v1053
      %v1055 = vpop.f32.mrb[0].mxu0
      %v1056 = vpop.f32.mrb[0].mxu0
      %v1057 = vadd.f32 %v412, %v1056
      %v1058 = vpop.f32.mrb[0].mxu0
      %1059 = vmatprep.mubr.bf16.mxu0 0
      %1060 = vmatmul.mubr.bf16.gmra.mrb[0].mxu0 %v774
      %v1061 = vpop.f32.mrb[0].mxu0
      %v1062 = vadd.f32 %v412, %v1061
      %v1063 = vpop.f32.mrb[0].mxu0
      %v1064 = vpop.f32.mrb[0].mxu0
      %v1065 = vadd.f32 %v412, %v1064
      %v1066 = vpop.f32.mrb[0].mxu0
      %1067 = vmatprep.mubr.bf16.mxu0 0
      %1068 = vmatmul.mubr.bf16.gmra.mrb[0].mxu0 %v777
      %v1069 = vpop.f32.mrb[0].mxu0
      %v1070 = vadd.f32 %v412, %v1069
      %v1071 = vpop.f32.mrb[0].mxu0
      %v1072 = vpop.f32.mrb[0].mxu0
      %v1073 = vadd.f32 %v412, %v1072
      %v1074 = vpop.f32.mrb[0].mxu0
      %1075 = vmatprep.mubr.bf16.mxu0 0
      %1076 = vmatmul.mubr.bf16.gmra.mrb[0].mxu0 %v780
      %v1077 = vpop.f32.mrb[0].mxu0
      %v1078 = vadd.f32 %v412, %v1077
      %v1079 = vpop.f32.mrb[0].mxu0
      %v1080 = vpop.f32.mrb[0].mxu0
      %v1081 = vadd.f32 %v412, %v1080
      %v1082 = vpop.f32.mrb[0].mxu0
      %1083 = vmatprep.mubr.bf16.mxu0 0
      %1084 = vmatmul.mubr.bf16.gmra.mrb[0].mxu0 %v783
      %v1085 = vpop.f32.mrb[0].mxu0
      %v1086 = vadd.f32 %v412, %v1085
      %v1087 = vpop.f32.mrb[0].mxu0
      %v1088 = vpop.f32.mrb[0].mxu0
      %v1089 = vadd.f32 %v412, %v1088
      %v1090 = vpop.f32.mrb[0].mxu0
      %1091 = vmatprep.mubr.bf16.mxu0 0
      %1092 = vmatmul.mubr.bf16.gmra.mrb[0].mxu0 %v786
      %v1093 = vpop.f32.mrb[0].mxu0
      %v1094 = vadd.f32 %v412, %v1093
      %v1095 = vpop.f32.mrb[0].mxu0
      %v1096 = vpop.f32.mrb[0].mxu0
      %v1097 = vadd.f32 %v412, %v1096
      %v1098 = vpop.f32.mrb[0].mxu0
      %1099 = vmatprep.mubr.bf16.mxu0 0
      %1100 = vmatmul.mubr.bf16.gmra.mrb[0].mxu0 %v789
      %v1101 = vpop.f32.mrb[0].mxu0
      %v1102 = vadd.f32 %v412, %v1101
      %v1103 = vpop.f32.mrb[0].mxu0
      %v1104 = vpop.f32.mrb[0].mxu0
      %v1105 = vadd.f32 %v412, %v1104
      %v1106 = vpop.f32.mrb[0].mxu0
      %1107 = vmatprep.mubr.bf16.mxu0 0
      %1108 = vmatmul.mubr.bf16.gmra.mrb[0].mxu0 %v792
      %v1109 = vpop.f32.mrb[0].mxu0
      %v1110 = vadd.f32 %v412, %v1109
      %v1111 = vpop.f32.mrb[0].mxu0
      %v1112 = vpop.f32.mrb[0].mxu0
      %v1113 = vadd.f32 %v412, %v1112
      %v1114 = vpop.f32.mrb[0].mxu0
      %1115 = vmatprep.mubr.bf16.mxu0 0
      %1116 = vmatmul.mubr.bf16.gmra.mrb[0].mxu0 %v795
      %v1117 = vpop.f32.mrb[0].mxu0
      %v1118 = vadd.f32 %v412, %v1117
      %v1119 = vpop.f32.mrb[0].mxu0
      %v1120 = vpop.f32.mrb[0].mxu0
      %v1121 = vadd.f32 %v412, %v1120
      %v1122 = vpop.f32.mrb[0].mxu0
      %1123 = vmatprep.mubr.bf16.mxu0 0
      %1124 = vmatmul.mubr.bf16.gmra.mrb[0].mxu0 %v798
      %v1125 = vpop.f32.mrb[0].mxu0
      %v1126 = vadd.f32 %v412, %v1125
      %v1127 = vpop.f32.mrb[0].mxu0
      %v1128 = vpop.f32.mrb[0].mxu0
      %v1129 = vadd.f32 %v412, %v1128
      %v1130 = vpop.f32.mrb[0].mxu0
      %1131 = vmatprep.mubr.bf16.mxu0 0
      %1132 = vmatmul.mubr.bf16.gmra.mrb[0].mxu0 %v801
      %v1133 = vpop.f32.mrb[0].mxu0
      %v1134 = vadd.f32 %v412, %v1133
      %v1135 = vpop.f32.mrb[0].mxu0
      %v1136 = vpop.f32.mrb[0].mxu0
      %v1137 = vadd.f32 %v412, %v1136
      %v1138 = vpop.f32.mrb[0].mxu0
      %1139 = vmatprep.mubr.bf16.mxu0 0
      %1140 = vmatmul.mubr.bf16.gmra.mrb[0].mxu0 %v804
      %v1141 = vpop.f32.mrb[0].mxu0
      %v1142 = vadd.f32 %v412, %v1141
      %v1143 = vpop.f32.mrb[0].mxu0
      %v1144 = vpop.f32.mrb[0].mxu0
      %v1145 = vadd.f32 %v412, %v1144
      %v1146 = vpop.f32.mrb[0].mxu0
      %1147 = vmatprep.mubr.bf16.mxu0 0
      %1148 = vmatmul.mubr.bf16.gmra.mrb[0].mxu0 %v807
      %v1149 = vpop.f32.mrb[0].mxu0
      %v1150 = vadd.f32 %v412, %v1149
      %v1151 = vpop.f32.mrb[0].mxu0
      %v1152 = vpop.f32.mrb[0].mxu0
      %v1153 = vadd.f32 %v412, %v1152
      %v1154 = vpop.f32.mrb[0].mxu0
      %1155 = vmatprep.mubr.bf16.mxu0 0
      %1156 = vmatmul.mubr.bf16.gmra.mrb[0].mxu0 %v810
      %v1157 = vpop.f32.mrb[0].mxu0
      %v1158 = vadd.f32 %v412, %v1157
      %v1159 = vpop.f32.mrb[0].mxu0
      %v1160 = vpop.f32.mrb[0].mxu0
      %v1161 = vadd.f32 %v412, %v1160
      %v1162 = vpop.f32.mrb[0].mxu0
      %1163 = vmatprep.mubr.bf16.mxu0 0
      %1164 = vmatmul.mubr.bf16.gmra.mrb[0].mxu0 %v813
      %v1165 = vpop.f32.mrb[0].mxu0
      %v1166 = vadd.f32 %v412, %v1165
      %v1167 = vpop.f32.mrb[0].mxu0
      %v1168 = vpop.f32.mrb[0].mxu0
      %v1169 = vadd.f32 %v412, %v1168
      %v1170 = vpop.f32.mrb[0].mxu0
      %1171 = vmatprep.mubr.bf16.mxu0 0
      %1172 = vmatmul.mubr.bf16.gmra.mrb[0].mxu0 %v816
      %v1173 = vpop.f32.mrb[0].mxu0
      %v1174 = vadd.f32 %v412, %v1173
      %v1175 = vpop.f32.mrb[0].mxu0
      %v1176 = vpop.f32.mrb[0].mxu0
      %v1177 = vadd.f32 %v412, %v1176
      %v1178 = vpop.f32.mrb[0].mxu0
      %1179 = vmatprep.mubr.bf16.mxu0 0
      %1180 = vmatmul.mubr.bf16.gmra.mrb[0].mxu0 %v819
      %v1181 = vpop.f32.mrb[0].mxu0
      %v1182 = vadd.f32 %v412, %v1181
      %v1183 = vpop.f32.mrb[0].mxu0
      %v1184 = vpop.f32.mrb[0].mxu0
      %v1185 = vadd.f32 %v412, %v1184
      %v1186 = vpop.f32.mrb[0].mxu0
      %1187 = vmatprep.mubr.bf16.mxu0 0
      %1188 = vmatmul.mubr.bf16.gmra.mrb[0].mxu0 %v822
      %v1189 = vpop.f32.mrb[0].mxu0
      %v1190 = vadd.f32 %v412, %v1189
      %v1191 = vpop.f32.mrb[0].mxu0
      %v1192 = vpop.f32.mrb[0].mxu0
      %v1193 = vadd.f32 %v412, %v1192
      %v1194 = vpop.f32.mrb[0].mxu0
      %1195 = vmatprep.mubr.bf16.mxu0 0
      %1196 = vmatmul.mubr.bf16.gmra.mrb[0].mxu0 %v825
      %v1197 = vpop.f32.mrb[0].mxu0
      %v1198 = vadd.f32 %v412, %v1197
      %v1199 = vpop.f32.mrb[0].mxu0
      %v1200 = vpop.f32.mrb[0].mxu0
      %v1201 = vadd.f32 %v412, %v1200
      %v1202 = vpop.f32.mrb[0].mxu0
      %1203 = vmatprep.mubr.bf16.mxu0 0
      %1204 = vmatmul.mubr.bf16.gmra.mrb[0].mxu0 %v828
      %v1205 = vpop.f32.mrb[0].mxu0
      %v1206 = vadd.f32 %v412, %v1205
      %v1207 = vpop.f32.mrb[0].mxu0
      %v1208 = vpop.f32.mrb[0].mxu0
      %v1209 = vadd.f32 %v412, %v1208
      %v1210 = vpop.f32.mrb[0].mxu0
      %1211 = vmatprep.mubr.bf16.mxu0 0
      %1212 = vmatmul.mubr.bf16.gmra.mrb[0].mxu0 %v831
      %v1213 = vpop.f32.mrb[0].mxu0
      %v1214 = vadd.f32 %v412, %v1213
      %v1215 = vpop.f32.mrb[0].mxu0
      %v1216 = vpop.f32.mrb[0].mxu0
      %v1217 = vadd.f32 %v412, %v1216
      %v1218 = vpop.f32.mrb[0].mxu0
      %1219 = vmatprep.mubr.bf16.mxu0 0
      %1220 = vmatmul.mubr.bf16.gmra.mrb[0].mxu0 %v834
      %v1221 = vpop.f32.mrb[0].mxu0
      %v1222 = vadd.f32 %v412, %v1221
      %v1223 = vpop.f32.mrb[0].mxu0
      %v1224 = vpop.f32.mrb[0].mxu0
      %v1225 = vadd.f32 %v412, %v1224
      %v1226 = vpop.f32.mrb[0].mxu0
      %1227 = vmatprep.mubr.bf16.mxu0 0
      %1228 = vmatmul.mubr.bf16.gmra.mrb[0].mxu0 %v837
      %v1229 = vpop.f32.mrb[0].mxu0
      %v1230 = vadd.f32 %v412, %v1229
      %v1231 = vpop.f32.mrb[0].mxu0
      %v1232 = vpop.f32.mrb[0].mxu0
      %v1233 = vadd.f32 %v412, %v1232
      %v1234 = vpop.f32.mrb[0].mxu0
      %1235 = vmatprep.mubr.bf16.mxu0 0
      %1236 = vmatmul.mubr.bf16.gmra.mrb[0].mxu0 %v840
      %v1237 = vpop.f32.mrb[0].mxu0
      %v1238 = vadd.f32 %v412, %v1237
      %v1239 = vpop.f32.mrb[0].mxu0
      %v1240 = vpop.f32.mrb[0].mxu0
      %v1241 = vadd.f32 %v412, %v1240
      %v1242 = vpop.f32.mrb[0].mxu0
      %1243 = vmatprep.mubr.bf16.mxu0 0
      %1244 = vmatmul.mubr.bf16.gmra.mrb[0].mxu0 %v843
      %v1245 = vpop.f32.mrb[0].mxu0
      %v1246 = vadd.f32 %v412, %v1245
      %v1247 = vpop.f32.mrb[0].mxu0
      %v1248 = vpop.f32.mrb[0].mxu0
      %v1249 = vadd.f32 %v412, %v1248
      %v1250 = vpop.f32.mrb[0].mxu0
      %1251 = vmatprep.mubr.bf16.mxu0 0
      %1252 = vmatmul.mubr.bf16.gmra.mrb[0].mxu0 %v846
      %v1253 = vpop.f32.mrb[0].mxu0
      %v1254 = vadd.f32 %v412, %v1253
      %v1255 = vpop.f32.mrb[0].mxu0
      %v1256 = vpop.f32.mrb[0].mxu0
      %v1257 = vadd.f32 %v412, %v1256
      %v1258 = vpop.f32.mrb[0].mxu0
      %1259 = vmatprep.mubr.bf16.mxu0 0
      %1260 = vmatmul.mubr.bf16.gmra.mrb[0].mxu0 %v849
      %v1261 = vpop.f32.mrb[0].mxu0
      %v1262 = vadd.f32 %v412, %v1261
      %v1263 = vpop.f32.mrb[0].mxu0
      %v1264 = vpop.f32.mrb[0].mxu0
      %v1265 = vadd.f32 %v412, %v1264
      %v1266 = vpop.f32.mrb[0].mxu0
      %1267 = vmatprep.mubr.bf16.mxu0 0
      %1268 = vmatmul.mubr.bf16.gmra.mrb[0].mxu0 %v852
      %v1269 = vpop.f32.mrb[0].mxu0
      %v1270 = vadd.f32 %v412, %v1269
      %v1271 = vpop.f32.mrb[0].mxu0
      %v1272 = vpop.f32.mrb[0].mxu0
      %v1273 = vadd.f32 %v412, %v1272
      %v1274 = vpop.f32.mrb[0].mxu0
      %1275 = vmatprep.mubr.bf16.mxu0 0
      %1276 = vmatmul.mubr.bf16.gmra.mrb[0].mxu0 %v855
      %v1277 = vpop.f32.mrb[0].mxu0
      %v1278 = vadd.f32 %v412, %v1277
      %v1279 = vpop.f32.mrb[0].mxu0
      %v1280 = vpop.f32.mrb[0].mxu0
      %v1281 = vadd.f32 %v412, %v1280
      %v1282 = vpop.f32.mrb[0].mxu0
      %1283 = vmatprep.mubr.bf16.mxu0 0
      %1284 = vmatmul.mubr.bf16.gmra.mrb[0].mxu0 %v858
      %v1285 = vpop.f32.mrb[0].mxu0
      %v1286 = vadd.f32 %v412, %v1285
      %v1287 = vpop.f32.mrb[0].mxu0
      %v1288 = vpop.f32.mrb[0].mxu0
      %v1289 = vadd.f32 %v412, %v1288
      %v1290 = vpop.f32.mrb[0].mxu0
      %1291 = vmatprep.mubr.bf16.mxu0 0
      %1292 = vmatmul.mubr.bf16.gmra.mrb[0].mxu0 %v861
      %v1293 = vpop.f32.mrb[0].mxu0
      %v1294 = vadd.f32 %v412, %v1293
      %v1295 = vpop.f32.mrb[0].mxu0
      %v1296 = vpop.f32.mrb[0].mxu0
      %v1297 = vadd.f32 %v412, %v1296
      %v1298 = vpop.f32.mrb[0].mxu0
      %1299 = vmatprep.mubr.bf16.mxu0 0
      %1300 = vmatmul.mubr.bf16.gmra.mrb[0].mxu0 %v864
      %v1301 = vpop.f32.mrb[0].mxu0
      %v1302 = vadd.f32 %v412, %v1301
      %v1303 = vpop.f32.mrb[0].mxu0
      %v1304 = vpop.f32.mrb[0].mxu0
      %v1305 = vadd.f32 %v412, %v1304
      %v1306 = vpop.f32.mrb[0].mxu0
      %1307 = vmatprep.mubr.bf16.mxu0 0
      %1308 = vmatmul.mubr.bf16.gmra.mrb[0].mxu0 %v867
      %v1309 = vpop.f32.mrb[0].mxu0
      %v1310 = vadd.f32 %v412, %v1309
      %v1311 = vpop.f32.mrb[0].mxu0
      %v1312 = vpop.f32.mrb[0].mxu0
      %v1313 = vadd.f32 %v412, %v1312
      %v1314 = vpop.f32.mrb[0].mxu0
      %1315 = vmatprep.mubr.bf16.mxu0 0
      %1316 = vmatmul.mubr.bf16.gmra.mrb[0].mxu0 %v870
      %v1317 = vpop.f32.mrb[0].mxu0
      %v1318 = vadd.f32 %v412, %v1317
      %v1319 = vpop.f32.mrb[0].mxu0
      %v1320 = vpop.f32.mrb[0].mxu0
      %v1321 = vadd.f32 %v412, %v1320
      %v1322 = vpop.f32.mrb[0].mxu0
      %1323 = vmatprep.mubr.bf16.mxu0 0
      %1324 = vmatmul.mubr.bf16.gmra.mrb[0].mxu0 %v873
      %v1325 = vpop.f32.mrb[0].mxu0
      %v1326 = vadd.f32 %v412, %v1325
      %v1327 = vpop.f32.mrb[0].mxu0
      %v1328 = vpop.f32.mrb[0].mxu0
      %v1329 = vadd.f32 %v412, %v1328
      %v1330 = vpop.f32.mrb[0].mxu0
      %1331 = vmatprep.mubr.bf16.mxu0 0
      %1332 = vmatmul.mubr.bf16.gmra.mrb[0].mxu0 %v876
      %v1333 = vpop.f32.mrb[0].mxu0
      %v1334 = vadd.f32 %v412, %v1333
      %v1335 = vpop.f32.mrb[0].mxu0
      %v1336 = vpop.f32.mrb[0].mxu0
      %v1337 = vadd.f32 %v412, %v1336
      %v1338 = vpop.f32.mrb[0].mxu0
      %1339 = vmatprep.mubr.bf16.mxu0 0
      %1340 = vmatmul.mubr.bf16.gmra.mrb[0].mxu0 %v879
      %v1341 = vpop.f32.mrb[0].mxu0
      %v1342 = vadd.f32 %v412, %v1341
      %v1343 = vpop.f32.mrb[0].mxu0
      %v1344 = vpop.f32.mrb[0].mxu0
      %v1345 = vadd.f32 %v412, %v1344
      %v1346 = vpop.f32.mrb[0].mxu0
      %1347 = vmatprep.mubr.bf16.mxu0 0
      %1348 = vmatmul.mubr.bf16.gmra.mrb[0].mxu0 %v882
      %v1349 = vpop.f32.mrb[0].mxu0
      %v1350 = vadd.f32 %v412, %v1349
      %v1351 = vpop.f32.mrb[0].mxu0
      %v1352 = vpop.f32.mrb[0].mxu0
      %v1353 = vadd.f32 %v412, %v1352
      %v1354 = vpop.f32.mrb[0].mxu0
      %1355 = vmatprep.mubr.bf16.mxu0 0
      %1356 = vmatmul.mubr.bf16.gmra.mrb[0].mxu0 %v885
      %v1357 = vpop.f32.mrb[0].mxu0
      %v1358 = vadd.f32 %v412, %v1357
      %v1359 = vpop.f32.mrb[0].mxu0
      %v1360 = vpop.f32.mrb[0].mxu0
      %v1361 = vadd.f32 %v412, %v1360
      %v1362 = vpop.f32.mrb[0].mxu0
      %1363 = vmatprep.mubr.bf16.mxu0 0
      %1364 = vmatmul.mubr.bf16.gmra.mrb[0].mxu0 %v888
      %v1365 = vpop.f32.mrb[0].mxu0
      %v1366 = vadd.f32 %v412, %v1365
      %v1367 = vpop.f32.mrb[0].mxu0
      %v1368 = vpop.f32.mrb[0].mxu0
      %v1369 = vadd.f32 %v412, %v1368
      %v1370 = vpop.f32.mrb[0].mxu0
      %1371 = vmatprep.mubr.bf16.mxu0 0
      %1372 = vmatmul.mubr.bf16.gmra.mrb[0].mxu0 %v891
      %v1373 = vpop.f32.mrb[0].mxu0
      %v1374 = vadd.f32 %v412, %v1373
      %v1375 = vpop.f32.mrb[0].mxu0
      %v1376 = vpop.f32.mrb[0].mxu0
      %v1377 = vadd.f32 %v412, %v1376
      %v1378 = vpop.f32.mrb[0].mxu0
      %1379 = vmatprep.mubr.bf16.mxu0 0
      %1380 = vmatmul.mubr.bf16.gmra.mrb[0].mxu0 %v894
      %v1381 = vpop.f32.mrb[0].mxu0
      %v1382 = vadd.f32 %v412, %v1381
      %v1383 = vpop.f32.mrb[0].mxu0
      %v1384 = vpop.f32.mrb[0].mxu0
      %v1385 = vadd.f32 %v412, %v1384
      %v1386 = vpop.f32.mrb[0].mxu0
      %1387 = vmatprep.mubr.bf16.mxu0 0
      %1388 = vmatmul.mubr.bf16.gmra.mrb[0].mxu0 %v897
      %v1389 = vpop.f32.mrb[0].mxu0
      %v1390 = vadd.f32 %v412, %v1389
      %v1391 = vpop.f32.mrb[0].mxu0
      %v1392 = vpop.f32.mrb[0].mxu0
      %v1393 = vadd.f32 %v412, %v1392
      %v1394 = vpop.f32.mrb[0].mxu0
      %1395 = vmatprep.mubr.bf16.mxu0 0
      %1396 = vmatmul.mubr.bf16.gmra.mrb[0].mxu0 %v900
      %v1397 = vpop.f32.mrb[0].mxu0
      %v1398 = vadd.f32 %v412, %v1397
      %v1399 = vpop.f32.mrb[0].mxu0
      %v1400 = vpop.f32.mrb[0].mxu0
      %v1401 = vadd.f32 %v412, %v1400
      %v1402 = vpop.f32.mrb[0].mxu0
      %1403 = vmatprep.mubr.bf16.mxu0 0
      %1404 = vmatmul.mubr.bf16.gmra.mrb[0].mxu0 %v903
      %v1405 = vpop.f32.mrb[0].mxu0
      %v1406 = vadd.f32 %v412, %v1405
      %v1407 = vpop.f32.mrb[0].mxu0
      %v1408 = vpop.f32.mrb[0].mxu0
      %v1409 = vadd.f32 %v412, %v1408
      %v1410 = vpop.f32.mrb[0].mxu0
      %1411 = vmatprep.mubr.bf16.mxu0 0
      %1412 = vmatmul.mubr.bf16.gmra.mrb[0].mxu0 %v906
      %v1413 = vpop.f32.mrb[0].mxu0
      %v1414 = vadd.f32 %v412, %v1413
      %v1415 = vpop.f32.mrb[0].mxu0
      %v1416 = vpop.f32.mrb[0].mxu0
      %v1417 = vadd.f32 %v412, %v1416
      %v1418 = vpop.f32.mrb[0].mxu0
      %1419 = vmatprep.mubr.bf16.mxu0 0
      %1420 = vmatmul.mubr.bf16.gmra.mrb[0].mxu0 %v909
      %v1421 = vpop.f32.mrb[0].mxu0
      %v1422 = vadd.f32 %v412, %v1421
      %v1423 = vpop.f32.mrb[0].mxu0
      %v1424 = vpop.f32.mrb[0].mxu0
      %v1425 = vadd.f32 %v412, %v1424
      %v1426 = vpop.f32.mrb[0].mxu0
      %1427 = vmatprep.mubr.bf16.mxu0 0
      %1428 = vmatmul.mubr.bf16.gmra.mrb[0].mxu0 %v912
      %v1429 = vpop.f32.mrb[0].mxu0
      %v1430 = vadd.f32 %v412, %v1429
      %v1431 = vpop.f32.mrb[0].mxu0
      %v1432 = vpop.f32.mrb[0].mxu0
      %v1433 = vadd.f32 %v412, %v1432
      %v1434 = vpop.f32.mrb[0].mxu0
      %1435 = vmatprep.mubr.bf16.mxu0 0
      %1436 = vmatmul.mubr.bf16.gmra.mrb[0].mxu0 %v915
      %v1437 = vpop.f32.mrb[0].mxu0
      %v1438 = vadd.f32 %v412, %v1437
      %v1439 = vpop.f32.mrb[0].mxu0
      %v1440 = vpop.f32.mrb[0].mxu0
      %v1441 = vadd.f32 %v412, %v1440
      %v1442 = vpop.f32.mrb[0].mxu0
      %1443 = vmatprep.mubr.bf16.mxu0 0
      %1444 = vmatmul.mubr.bf16.gmra.mrb[0].mxu0 %v918
      %v1445 = vpop.f32.mrb[0].mxu0
      %v1446 = vadd.f32 %v412, %v1445
      %v1447 = vpop.f32.mrb[0].mxu0
      %v1448 = vpop.f32.mrb[0].mxu0
      %v1449 = vadd.f32 %v412, %v1448
      %v1450 = vpop.f32.mrb[0].mxu0
      %1451 = vmatprep.mubr.bf16.mxu0 0
      %1452 = vmatmul.mubr.bf16.gmra.mrb[0].mxu0 %v921
      %v1453 = vpop.f32.mrb[0].mxu0
      %v1454 = vadd.f32 %v412, %v1453
      %v1455 = vpop.f32.mrb[0].mxu0
      %v1456 = vpop.f32.mrb[0].mxu0
      %v1457 = vadd.f32 %v412, %v1456
      %v1458 = vpop.f32.mrb[0].mxu0
      %1459 = vmatprep.mubr.bf16.mxu0 0
      %1460 = vmatmul.mubr.bf16.gmra.mrb[0].mxu0 %v924
      %v1461 = vpop.f32.mrb[0].mxu0
      %v1462 = vadd.f32 %v412, %v1461
      %v1463 = vpop.f32.mrb[0].mxu0
      %v1464 = vpop.f32.mrb[0].mxu0
      %v1465 = vadd.f32 %v412, %v1464
      %v1466 = vpop.f32.mrb[0].mxu0
      %1467 = vmatprep.mubr.bf16.mxu0 0
      %1468 = vmatmul.mubr.bf16.gmra.mrb[0].mxu0 %v927
      %v1469 = vpop.f32.mrb[0].mxu0
      %v1470 = vadd.f32 %v412, %v1469
      %v1471 = vpop.f32.mrb[0].mxu0
      %v1472 = vpop.f32.mrb[0].mxu0
      %v1473 = vadd.f32 %v412, %v1472
      %v1474 = vpop.f32.mrb[0].mxu0
      %1475 = vmatprep.mubr.bf16.mxu0 0
      %1476 = vmatmul.mubr.bf16.gmra.mrb[0].mxu0 %v930
      %v1477 = vpop.f32.mrb[0].mxu0
      %v1478 = vadd.f32 %v412, %v1477
      %v1479 = vpop.f32.mrb[0].mxu0
      %v1480 = vpop.f32.mrb[0].mxu0
      %v1481 = vadd.f32 %v412, %v1480
      %v1482 = vpop.f32.mrb[0].mxu0
      %1483 = vdwg.mxu0
      %vm1484 = vcmp.gt.f32.partialorder %v974, 0.0
      %vm1485 = vcmp.gt.f32.partialorder %v977, 0.0
      %vm1486 = vcmp.gt.f32.partialorder %v982, 0.0
      %vm1487 = vcmp.gt.f32.partialorder %v985, 0.0
      %vm1488 = vcmp.gt.f32.partialorder %v990, 0.0
      %vm1489 = vcmp.gt.f32.partialorder %v993, 0.0
      %vm1490 = vcmp.gt.f32.partialorder %v998, 0.0
      %vm1491 = vcmp.gt.f32.partialorder %v1001, 0.0
      %vm1492 = vcmp.gt.f32.partialorder %v1006, 0.0
      %vm1493 = vcmp.gt.f32.partialorder %v1009, 0.0
      %vm1494 = vcmp.gt.f32.partialorder %v1014, 0.0
      %vm1495 = vcmp.gt.f32.partialorder %v1017, 0.0
      %vm1496 = vcmp.gt.f32.partialorder %v1022, 0.0
      %vm1497 = vcmp.gt.f32.partialorder %v1025, 0.0
      %vm1498 = vcmp.gt.f32.partialorder %v1030, 0.0
      %vm1499 = vcmp.gt.f32.partialorder %v1033, 0.0
      %vm1500 = vcmp.gt.f32.partialorder %v1038, 0.0
      %vm1501 = vcmp.gt.f32.partialorder %v1041, 0.0
      %vm1502 = vcmp.gt.f32.partialorder %v1046, 0.0
      %vm1503 = vcmp.gt.f32.partialorder %v1049, 0.0
      %vm1504 = vcmp.gt.f32.partialorder %v1054, 0.0
      %vm1505 = vcmp.gt.f32.partialorder %v1057, 0.0
      %vm1506 = vcmp.gt.f32.partialorder %v1062, 0.0
      %vm1507 = vcmp.gt.f32.partialorder %v1065, 0.0
      %vm1508 = vcmp.gt.f32.partialorder %v1070, 0.0
      %vm1509 = vcmp.gt.f32.partialorder %v1073, 0.0
      %vm1510 = vcmp.gt.f32.partialorder %v1078, 0.0
      %vm1511 = vcmp.gt.f32.partialorder %v1081, 0.0
      %vm1512 = vcmp.gt.f32.partialorder %v1086, 0.0
      %vm1513 = vcmp.gt.f32.partialorder %v1089, 0.0
      %vm1514 = vcmp.gt.f32.partialorder %v1094, 0.0
      %vm1515 = vcmp.gt.f32.partialorder %v1097, 0.0
      %vm1516 = vcmp.gt.f32.partialorder %v1102, 0.0
      %vm1517 = vcmp.gt.f32.partialorder %v1105, 0.0
      %vm1518 = vcmp.gt.f32.partialorder %v1110, 0.0
      %vm1519 = vcmp.gt.f32.partialorder %v1113, 0.0
      %vm1520 = vcmp.gt.f32.partialorder %v1118, 0.0
      %vm1521 = vcmp.gt.f32.partialorder %v1121, 0.0
      %vm1522 = vcmp.gt.f32.partialorder %v1126, 0.0
      %vm1523 = vcmp.gt.f32.partialorder %v1129, 0.0
      %vm1524 = vcmp.gt.f32.partialorder %v1134, 0.0
      %vm1525 = vcmp.gt.f32.partialorder %v1137, 0.0
      %vm1526 = vcmp.gt.f32.partialorder %v1142, 0.0
      %vm1527 = vcmp.gt.f32.partialorder %v1145, 0.0
      %vm1528 = vcmp.gt.f32.partialorder %v1150, 0.0
      %vm1529 = vcmp.gt.f32.partialorder %v1153, 0.0
      %vm1530 = vcmp.gt.f32.partialorder %v1158, 0.0
      %vm1531 = vcmp.gt.f32.partialorder %v1161, 0.0
      %vm1532 = vcmp.gt.f32.partialorder %v1166, 0.0
      %vm1533 = vcmp.gt.f32.partialorder %v1169, 0.0
      %vm1534 = vcmp.gt.f32.partialorder %v1174, 0.0
      %vm1535 = vcmp.gt.f32.partialorder %v1177, 0.0
      %vm1536 = vcmp.gt.f32.partialorder %v1182, 0.0
      %vm1537 = vcmp.gt.f32.partialorder %v1185, 0.0
      %vm1538 = vcmp.gt.f32.partialorder %v1190, 0.0
      %vm1539 = vcmp.gt.f32.partialorder %v1193, 0.0
      %vm1540 = vcmp.gt.f32.partialorder %v1198, 0.0
      %vm1541 = vcmp.gt.f32.partialorder %v1201, 0.0
      %vm1542 = vcmp.gt.f32.partialorder %v1206, 0.0
      %vm1543 = vcmp.gt.f32.partialorder %v1209, 0.0
      %vm1544 = vcmp.gt.f32.partialorder %v1214, 0.0
      %vm1545 = vcmp.gt.f32.partialorder %v1217, 0.0
      %vm1546 = vcmp.gt.f32.partialorder %v1222, 0.0
      %vm1547 = vcmp.gt.f32.partialorder %v1225, 0.0
      %vm1548 = vcmp.gt.f32.partialorder %v1230, 0.0
      %vm1549 = vcmp.gt.f32.partialorder %v1233, 0.0
      %vm1550 = vcmp.gt.f32.partialorder %v1238, 0.0
      %vm1551 = vcmp.gt.f32.partialorder %v1241, 0.0
      %vm1552 = vcmp.gt.f32.partialorder %v1246, 0.0
      %vm1553 = vcmp.gt.f32.partialorder %v1249, 0.0
      %vm1554 = vcmp.gt.f32.partialorder %v1254, 0.0
      %vm1555 = vcmp.gt.f32.partialorder %v1257, 0.0
      %vm1556 = vcmp.gt.f32.partialorder %v1262, 0.0
      %vm1557 = vcmp.gt.f32.partialorder %v1265, 0.0
      %vm1558 = vcmp.gt.f32.partialorder %v1270, 0.0
      %vm1559 = vcmp.gt.f32.partialorder %v1273, 0.0
      %vm1560 = vcmp.gt.f32.partialorder %v1278, 0.0
      %vm1561 = vcmp.gt.f32.partialorder %v1281, 0.0
      %vm1562 = vcmp.gt.f32.partialorder %v1286, 0.0
      %vm1563 = vcmp.gt.f32.partialorder %v1289, 0.0
      %vm1564 = vcmp.gt.f32.partialorder %v1294, 0.0
      %vm1565 = vcmp.gt.f32.partialorder %v1297, 0.0
      %vm1566 = vcmp.gt.f32.partialorder %v1302, 0.0
      %vm1567 = vcmp.gt.f32.partialorder %v1305, 0.0
      %vm1568 = vcmp.gt.f32.partialorder %v1310, 0.0
      %vm1569 = vcmp.gt.f32.partialorder %v1313, 0.0
      %vm1570 = vcmp.gt.f32.partialorder %v1318, 0.0
      %vm1571 = vcmp.gt.f32.partialorder %v1321, 0.0
      %vm1572 = vcmp.gt.f32.partialorder %v1326, 0.0
      %vm1573 = vcmp.gt.f32.partialorder %v1329, 0.0
      %vm1574 = vcmp.gt.f32.partialorder %v1334, 0.0
      %vm1575 = vcmp.gt.f32.partialorder %v1337, 0.0
      %vm1576 = vcmp.gt.f32.partialorder %v1342, 0.0
      %vm1577 = vcmp.gt.f32.partialorder %v1345, 0.0
      %vm1578 = vcmp.gt.f32.partialorder %v1350, 0.0
      %vm1579 = vcmp.gt.f32.partialorder %v1353, 0.0
      %vm1580 = vcmp.gt.f32.partialorder %v1358, 0.0
      %vm1581 = vcmp.gt.f32.partialorder %v1361, 0.0
      %vm1582 = vcmp.gt.f32.partialorder %v1366, 0.0
      %vm1583 = vcmp.gt.f32.partialorder %v1369, 0.0
      %vm1584 = vcmp.gt.f32.partialorder %v1374, 0.0
      %vm1585 = vcmp.gt.f32.partialorder %v1377, 0.0
      %vm1586 = vcmp.gt.f32.partialorder %v1382, 0.0
      %vm1587 = vcmp.gt.f32.partialorder %v1385, 0.0
      %vm1588 = vcmp.gt.f32.partialorder %v1390, 0.0
      %vm1589 = vcmp.gt.f32.partialorder %v1393, 0.0
      %vm1590 = vcmp.gt.f32.partialorder %v1398, 0.0
      %vm1591 = vcmp.gt.f32.partialorder %v1401, 0.0
      %vm1592 = vcmp.gt.f32.partialorder %v1406, 0.0
      %vm1593 = vcmp.gt.f32.partialorder %v1409, 0.0
      %vm1594 = vcmp.gt.f32.partialorder %v1414, 0.0
      %vm1595 = vcmp.gt.f32.partialorder %v1417, 0.0
      %vm1596 = vcmp.gt.f32.partialorder %v1422, 0.0
      %vm1597 = vcmp.gt.f32.partialorder %v1425, 0.0
      %vm1598 = vcmp.gt.f32.partialorder %v1430, 0.0
      %vm1599 = vcmp.gt.f32.partialorder %v1433, 0.0
      %vm1600 = vcmp.gt.f32.partialorder %v1438, 0.0
      %vm1601 = vcmp.gt.f32.partialorder %v1441, 0.0
      %vm1602 = vcmp.gt.f32.partialorder %v1446, 0.0
      %vm1603 = vcmp.gt.f32.partialorder %v1449, 0.0
      %vm1604 = vcmp.gt.f32.partialorder %v1454, 0.0
      %vm1605 = vcmp.gt.f32.partialorder %v1457, 0.0
      %vm1606 = vcmp.gt.f32.partialorder %v1462, 0.0
      %vm1607 = vcmp.gt.f32.partialorder %v1465, 0.0
      %vm1608 = vcmp.gt.f32.partialorder %v1470, 0.0
      %vm1609 = vcmp.gt.f32.partialorder %v1473, 0.0
      %vm1610 = vcmp.gt.f32.partialorder %v1478, 0.0
      %vm1611 = vcmp.gt.f32.partialorder %v1481, 0.0
      %v1612 = vmul.f32 %v974, 0.01
      %v1613 = vmul.f32 %v977, 0.01
      %v1614 = vmul.f32 %v982, 0.01
      %v1615 = vmul.f32 %v985, 0.01
      %v1616 = vmul.f32 %v990, 0.01
      %v1617 = vmul.f32 %v993, 0.01
      %v1618 = vmul.f32 %v998, 0.01
      %v1619 = vmul.f32 %v1001, 0.01
      %v1620 = vmul.f32 %v1006, 0.01
      %v1621 = vmul.f32 %v1009, 0.01
      %v1622 = vmul.f32 %v1014, 0.01
      %v1623 = vmul.f32 %v1017, 0.01
      %v1624 = vmul.f32 %v1022, 0.01
      %v1625 = vmul.f32 %v1025, 0.01
      %v1626 = vmul.f32 %v1030, 0.01
      %v1627 = vmul.f32 %v1033, 0.01
      %v1628 = vmul.f32 %v1038, 0.01
      %v1629 = vmul.f32 %v1041, 0.01
      %v1630 = vmul.f32 %v1046, 0.01
      %v1631 = vmul.f32 %v1049, 0.01
      %v1632 = vmul.f32 %v1054, 0.01
      %v1633 = vmul.f32 %v1057, 0.01
      %v1634 = vmul.f32 %v1062, 0.01
      %v1635 = vmul.f32 %v1065, 0.01
      %v1636 = vmul.f32 %v1070, 0.01
      %v1637 = vmul.f32 %v1073, 0.01
      %v1638 = vmul.f32 %v1078, 0.01
      %v1639 = vmul.f32 %v1081, 0.01
      %v1640 = vmul.f32 %v1086, 0.01
      %v1641 = vmul.f32 %v1089, 0.01
      %v1642 = vmul.f32 %v1094, 0.01
      %v1643 = vmul.f32 %v1097, 0.01
      %v1644 = vmul.f32 %v1102, 0.01
      %v1645 = vmul.f32 %v1105, 0.01
      %v1646 = vmul.f32 %v1110, 0.01
      %v1647 = vmul.f32 %v1113, 0.01
      %v1648 = vmul.f32 %v1118, 0.01
      %v1649 = vmul.f32 %v1121, 0.01
      %v1650 = vmul.f32 %v1126, 0.01
      %v1651 = vmul.f32 %v1129, 0.01
      %v1652 = vmul.f32 %v1134, 0.01
      %v1653 = vmul.f32 %v1137, 0.01
      %v1654 = vmul.f32 %v1142, 0.01
      %v1655 = vmul.f32 %v1145, 0.01
      %v1656 = vmul.f32 %v1150, 0.01
      %v1657 = vmul.f32 %v1153, 0.01
      %v1658 = vmul.f32 %v1158, 0.01
      %v1659 = vmul.f32 %v1161, 0.01
      %v1660 = vmul.f32 %v1166, 0.01
      %v1661 = vmul.f32 %v1169, 0.01
      %v1662 = vmul.f32 %v1174, 0.01
      %v1663 = vmul.f32 %v1177, 0.01
      %v1664 = vmul.f32 %v1182, 0.01
      %v1665 = vmul.f32 %v1185, 0.01
      %v1666 = vmul.f32 %v1190, 0.01
      %v1667 = vmul.f32 %v1193, 0.01
      %v1668 = vmul.f32 %v1198, 0.01
      %v1669 = vmul.f32 %v1201, 0.01
      %v1670 = vmul.f32 %v1206, 0.01
      %v1671 = vmul.f32 %v1209, 0.01
      %v1672 = vmul.f32 %v1214, 0.01
      %v1673 = vmul.f32 %v1217, 0.01
      %v1674 = vmul.f32 %v1222, 0.01
      %v1675 = vmul.f32 %v1225, 0.01
      %v1676 = vmul.f32 %v1230, 0.01
      %v1677 = vmul.f32 %v1233, 0.01
      %v1678 = vmul.f32 %v1238, 0.01
      %v1679 = vmul.f32 %v1241, 0.01
      %v1680 = vmul.f32 %v1246, 0.01
      %v1681 = vmul.f32 %v1249, 0.01
      %v1682 = vmul.f32 %v1254, 0.01
      %v1683 = vmul.f32 %v1257, 0.01
      %v1684 = vmul.f32 %v1262, 0.01
      %v1685 = vmul.f32 %v1265, 0.01
      %v1686 = vmul.f32 %v1270, 0.01
      %v1687 = vmul.f32 %v1273, 0.01
      %v1688 = vmul.f32 %v1278, 0.01
      %v1689 = vmul.f32 %v1281, 0.01
      %v1690 = vmul.f32 %v1286, 0.01
      %v1691 = vmul.f32 %v1289, 0.01
      %v1692 = vmul.f32 %v1294, 0.01
      %v1693 = vmul.f32 %v1297, 0.01
      %v1694 = vmul.f32 %v1302, 0.01
      %v1695 = vmul.f32 %v1305, 0.01
      %v1696 = vmul.f32 %v1310, 0.01
      %v1697 = vmul.f32 %v1313, 0.01
      %v1698 = vmul.f32 %v1318, 0.01
      %v1699 = vmul.f32 %v1321, 0.01
      %v1700 = vmul.f32 %v1326, 0.01
      %v1701 = vmul.f32 %v1329, 0.01
      %v1702 = vmul.f32 %v1334, 0.01
      %v1703 = vmul.f32 %v1337, 0.01
      %v1704 = vmul.f32 %v1342, 0.01
      %v1705 = vmul.f32 %v1345, 0.01
      %v1706 = vmul.f32 %v1350, 0.01
      %v1707 = vmul.f32 %v1353, 0.01
      %v1708 = vmul.f32 %v1358, 0.01
      %v1709 = vmul.f32 %v1361, 0.01
      %v1710 = vmul.f32 %v1366, 0.01
      %v1711 = vmul.f32 %v1369, 0.01
      %v1712 = vmul.f32 %v1374, 0.01
      %v1713 = vmul.f32 %v1377, 0.01
      %v1714 = vmul.f32 %v1382, 0.01
      %v1715 = vmul.f32 %v1385, 0.01
      %v1716 = vmul.f32 %v1390, 0.01
      %v1717 = vmul.f32 %v1393, 0.01
      %v1718 = vmul.f32 %v1398, 0.01
      %v1719 = vmul.f32 %v1401, 0.01
      %v1720 = vmul.f32 %v1406, 0.01
      %v1721 = vmul.f32 %v1409, 0.01
      %v1722 = vmul.f32 %v1414, 0.01
      %v1723 = vmul.f32 %v1417, 0.01
      %v1724 = vmul.f32 %v1422, 0.01
      %v1725 = vmul.f32 %v1425, 0.01
      %v1726 = vmul.f32 %v1430, 0.01
      %v1727 = vmul.f32 %v1433, 0.01
      %v1728 = vmul.f32 %v1438, 0.01
      %v1729 = vmul.f32 %v1441, 0.01
      %v1730 = vmul.f32 %v1446, 0.01
      %v1731 = vmul.f32 %v1449, 0.01
      %v1732 = vmul.f32 %v1454, 0.01
      %v1733 = vmul.f32 %v1457, 0.01
      %v1734 = vmul.f32 %v1462, 0.01
      %v1735 = vmul.f32 %v1465, 0.01
      %v1736 = vmul.f32 %v1470, 0.01
      %v1737 = vmul.f32 %v1473, 0.01
      %v1738 = vmul.f32 %v1478, 0.01
      %v1739 = vmul.f32 %v1481, 0.01
      %v1740 = vsel %vm1484, %v974, %v1612
      %v1741 = vsel %vm1485, %v977, %v1613
      %v1742 = vsel %vm1486, %v982, %v1614
      %v1743 = vsel %vm1487, %v985, %v1615
      %v1744 = vsel %vm1488, %v990, %v1616
      %v1745 = vsel %vm1489, %v993, %v1617
      %v1746 = vsel %vm1490, %v998, %v1618
      %v1747 = vsel %vm1491, %v1001, %v1619
      %v1748 = vsel %vm1492, %v1006, %v1620
      %v1749 = vsel %vm1493, %v1009, %v1621
      %v1750 = vsel %vm1494, %v1014, %v1622
      %v1751 = vsel %vm1495, %v1017, %v1623
      %v1752 = vsel %vm1496, %v1022, %v1624
      %v1753 = vsel %vm1497, %v1025, %v1625
      %v1754 = vsel %vm1498, %v1030, %v1626
      %v1755 = vsel %vm1499, %v1033, %v1627
      %v1756 = vsel %vm1500, %v1038, %v1628
      %v1757 = vsel %vm1501, %v1041, %v1629
      %v1758 = vsel %vm1502, %v1046, %v1630
      %v1759 = vsel %vm1503, %v1049, %v1631
      %v1760 = vsel %vm1504, %v1054, %v1632
      %v1761 = vsel %vm1505, %v1057, %v1633
      %v1762 = vsel %vm1506, %v1062, %v1634
      %v1763 = vsel %vm1507, %v1065, %v1635
      %v1764 = vsel %vm1508, %v1070, %v1636
      %v1765 = vsel %vm1509, %v1073, %v1637
      %v1766 = vsel %vm1510, %v1078, %v1638
      %v1767 = vsel %vm1511, %v1081, %v1639
      %v1768 = vsel %vm1512, %v1086, %v1640
      %v1769 = vsel %vm1513, %v1089, %v1641
      %v1770 = vsel %vm1514, %v1094, %v1642
      %v1771 = vsel %vm1515, %v1097, %v1643
      %v1772 = vsel %vm1516, %v1102, %v1644
      %v1773 = vsel %vm1517, %v1105, %v1645
      %v1774 = vsel %vm1518, %v1110, %v1646
      %v1775 = vsel %vm1519, %v1113, %v1647
      %v1776 = vsel %vm1520, %v1118, %v1648
      %v1777 = vsel %vm1521, %v1121, %v1649
      %v1778 = vsel %vm1522, %v1126, %v1650
      %v1779 = vsel %vm1523, %v1129, %v1651
      %v1780 = vsel %vm1524, %v1134, %v1652
      %v1781 = vsel %vm1525, %v1137, %v1653
      %v1782 = vsel %vm1526, %v1142, %v1654
      %v1783 = vsel %vm1527, %v1145, %v1655
      %v1784 = vsel %vm1528, %v1150, %v1656
      %v1785 = vsel %vm1529, %v1153, %v1657
      %v1786 = vsel %vm1530, %v1158, %v1658
      %v1787 = vsel %vm1531, %v1161, %v1659
      %v1788 = vsel %vm1532, %v1166, %v1660
      %v1789 = vsel %vm1533, %v1169, %v1661
      %v1790 = vsel %vm1534, %v1174, %v1662
      %v1791 = vsel %vm1535, %v1177, %v1663
      %v1792 = vsel %vm1536, %v1182, %v1664
      %v1793 = vsel %vm1537, %v1185, %v1665
      %v1794 = vsel %vm1538, %v1190, %v1666
      %v1795 = vsel %vm1539, %v1193, %v1667
      %v1796 = vsel %vm1540, %v1198, %v1668
      %v1797 = vsel %vm1541, %v1201, %v1669
      %v1798 = vsel %vm1542, %v1206, %v1670
      %v1799 = vsel %vm1543, %v1209, %v1671
      %v1800 = vsel %vm1544, %v1214, %v1672
      %v1801 = vsel %vm1545, %v1217, %v1673
      %v1802 = vsel %vm1546, %v1222, %v1674
      %v1803 = vsel %vm1547, %v1225, %v1675
      %v1804 = vsel %vm1548, %v1230, %v1676
      %v1805 = vsel %vm1549, %v1233, %v1677
      %v1806 = vsel %vm1550, %v1238, %v1678
      %v1807 = vsel %vm1551, %v1241, %v1679
      %v1808 = vsel %vm1552, %v1246, %v1680
      %v1809 = vsel %vm1553, %v1249, %v1681
      %v1810 = vsel %vm1554, %v1254, %v1682
      %v1811 = vsel %vm1555, %v1257, %v1683
      %v1812 = vsel %vm1556, %v1262, %v1684
      %v1813 = vsel %vm1557, %v1265, %v1685
      %v1814 = vsel %vm1558, %v1270, %v1686
      %v1815 = vsel %vm1559, %v1273, %v1687
      %v1816 = vsel %vm1560, %v1278, %v1688
      %v1817 = vsel %vm1561, %v1281, %v1689
      %v1818 = vsel %vm1562, %v1286, %v1690
      %v1819 = vsel %vm1563, %v1289, %v1691
      %v1820 = vsel %vm1564, %v1294, %v1692
      %v1821 = vsel %vm1565, %v1297, %v1693
      %v1822 = vsel %vm1566, %v1302, %v1694
      %v1823 = vsel %vm1567, %v1305, %v1695
      %v1824 = vsel %vm1568, %v1310, %v1696
      %v1825 = vsel %vm1569, %v1313, %v1697
      %v1826 = vsel %vm1570, %v1318, %v1698
      %v1827 = vsel %vm1571, %v1321, %v1699
      %v1828 = vsel %vm1572, %v1326, %v1700
      %v1829 = vsel %vm1573, %v1329, %v1701
      %v1830 = vsel %vm1574, %v1334, %v1702
      %v1831 = vsel %vm1575, %v1337, %v1703
      %v1832 = vsel %vm1576, %v1342, %v1704
      %v1833 = vsel %vm1577, %v1345, %v1705
      %v1834 = vsel %vm1578, %v1350, %v1706
      %v1835 = vsel %vm1579, %v1353, %v1707
      %v1836 = vsel %vm1580, %v1358, %v1708
      %v1837 = vsel %vm1581, %v1361, %v1709
      %v1838 = vsel %vm1582, %v1366, %v1710
      %v1839 = vsel %vm1583, %v1369, %v1711
      %v1840 = vsel %vm1584, %v1374, %v1712
      %v1841 = vsel %vm1585, %v1377, %v1713
      %v1842 = vsel %vm1586, %v1382, %v1714
      %v1843 = vsel %vm1587, %v1385, %v1715
      %v1844 = vsel %vm1588, %v1390, %v1716
      %v1845 = vsel %vm1589, %v1393, %v1717
      %v1846 = vsel %vm1590, %v1398, %v1718
      %v1847 = vsel %vm1591, %v1401, %v1719
      %v1848 = vsel %vm1592, %v1406, %v1720
      %v1849 = vsel %vm1593, %v1409, %v1721
      %v1850 = vsel %vm1594, %v1414, %v1722
      %v1851 = vsel %vm1595, %v1417, %v1723
      %v1852 = vsel %vm1596, %v1422, %v1724
      %v1853 = vsel %vm1597, %v1425, %v1725
      %v1854 = vsel %vm1598, %v1430, %v1726
      %v1855 = vsel %vm1599, %v1433, %v1727
      %v1856 = vsel %vm1600, %v1438, %v1728
      %v1857 = vsel %vm1601, %v1441, %v1729
      %v1858 = vsel %vm1602, %v1446, %v1730
      %v1859 = vsel %vm1603, %v1449, %v1731
      %v1860 = vsel %vm1604, %v1454, %v1732
      %v1861 = vsel %vm1605, %v1457, %v1733
      %v1862 = vsel %vm1606, %v1462, %v1734
      %v1863 = vsel %vm1607, %v1465, %v1735
      %v1864 = vsel %vm1608, %v1470, %v1736
      %v1865 = vsel %vm1609, %v1473, %v1737
      %v1866 = vsel %vm1610, %v1478, %v1738
      %v1867 = vsel %vm1611, %v1481, %v1739
      %v1868 = vld [vmem:[%s2] sm:$0xf]
      %v1869 = vld [vmem:[%s263] sm:$0xff]
      %1870 = vset.pattern.permute.xlu0 0
      %1871 = vperm.xlu0 %1870, %v1868
      %v1872 = vpop.permute.xlu0 %1871
      %v1873 = vlaneseq
      %v1874 = vshrl.u32 %v1873, 7
      %v1875 = vsub.s32 0, %v1874
      %v1876 = vrot.slane %v1869, %v1875
      %v1877 = vlaneseq
      %v1878 = vshrl.u32 %v1877, 7
      %v1879 = vsub.s32 1, %v1878
      %v1880 = vrot.slane %v1869, %v1879
      %v1881 = vlaneseq
      %v1882 = vshrl.u32 %v1881, 7
      %v1883 = vsub.s32 2, %v1882
      %v1884 = vrot.slane %v1869, %v1883
      %v1885 = vlaneseq
      %v1886 = vshrl.u32 %v1885, 7
      %v1887 = vsub.s32 3, %v1886
      %v1888 = vrot.slane %v1869, %v1887
      %v1889 = vlaneseq
      %v1890 = vshrl.u32 %v1889, 7
      %v1891 = vsub.s32 4, %v1890
      %v1892 = vrot.slane %v1869, %v1891
      %v1893 = vlaneseq
      %v1894 = vshrl.u32 %v1893, 7
      %v1895 = vsub.s32 5, %v1894
      %v1896 = vrot.slane %v1869, %v1895
      %v1897 = vlaneseq
      %v1898 = vshrl.u32 %v1897, 7
      %v1899 = vsub.s32 6, %v1898
      %v1900 = vrot.slane %v1869, %v1899
      %v1901 = vlaneseq
      %v1902 = vshrl.u32 %v1901, 7
      %v1903 = vsub.s32 7, %v1902
      %v1904 = vrot.slane %v1869, %v1903
      %vm1905 = vcmp.eq.s32.totalorder %v1872, %v1876
      %vm1906 = vcmp.eq.s32.totalorder %v1872, %v1880
      %vm1907 = vcmp.eq.s32.totalorder %v1872, %v1884
      %vm1908 = vcmp.eq.s32.totalorder %v1872, %v1888
      %vm1909 = vcmp.eq.s32.totalorder %v1872, %v1892
      %vm1910 = vcmp.eq.s32.totalorder %v1872, %v1896
      %vm1911 = vcmp.eq.s32.totalorder %v1872, %v1900
      %vm1912 = vcmp.eq.s32.totalorder %v1872, %v1904
      %v1913 = vsel %vm1905, 1, 0
      %v1914 = vsel %vm1906, 1, 0
      %v1915 = vsel %vm1907, 1, 0
      %v1916 = vsel %vm1908, 1, 0
      %v1917 = vsel %vm1909, 1, 0
      %v1918 = vsel %vm1910, 1, 0
      %v1919 = vsel %vm1911, 1, 0
      %v1920 = vsel %vm1912, 1, 0
      %v1921 = vcvt.s32.f32 %v1913
      %v1922 = vcvt.s32.f32 %v1914
      %v1923 = vcvt.s32.f32 %v1915
      %v1924 = vcvt.s32.f32 %v1916
      %v1925 = vcvt.s32.f32 %v1917
      %v1926 = vcvt.s32.f32 %v1918
      %v1927 = vcvt.s32.f32 %v1919
      %v1928 = vcvt.s32.f32 %v1920
      %v1929 = vpack.c.bf16 %v1921, %v1921
      %v1930 = vpack.c.bf16 %v1922, %v1922
      %v1931 = vpack.c.bf16 %v1923, %v1923
      %v1932 = vpack.c.bf16 %v1924, %v1924
      %v1933 = vpack.c.bf16 %v1925, %v1925
      %v1934 = vpack.c.bf16 %v1926, %v1926
      %v1935 = vpack.c.bf16 %v1927, %v1927
      %v1936 = vpack.c.bf16 %v1928, %v1928
      %v1937 = vld [vmem:[%s269] sm:$0xf]
      %v1938 = vpack.c.bf16 %v1741, %v1740
      %v1939 = vpack.c.bf16 %v1743, %v1742
      %v1940 = vpack.c.bf16 %v1745, %v1744
      %v1941 = vpack.c.bf16 %v1747, %v1746
      %v1942 = vpack.c.bf16 %v1749, %v1748
      %v1943 = vpack.c.bf16 %v1751, %v1750
      %v1944 = vpack.c.bf16 %v1753, %v1752
      %v1945 = vpack.c.bf16 %v1755, %v1754
      %v1946 = vpack.c.bf16 %v1757, %v1756
      %v1947 = vpack.c.bf16 %v1759, %v1758
      %v1948 = vpack.c.bf16 %v1761, %v1760
      %v1949 = vpack.c.bf16 %v1763, %v1762
      %v1950 = vpack.c.bf16 %v1765, %v1764
      %v1951 = vpack.c.bf16 %v1767, %v1766
      %v1952 = vpack.c.bf16 %v1769, %v1768
      %v1953 = vpack.c.bf16 %v1771, %v1770
      %v1954 = vpack.c.bf16 %v1773, %v1772
      %v1955 = vpack.c.bf16 %v1775, %v1774
      %v1956 = vpack.c.bf16 %v1777, %v1776
      %v1957 = vpack.c.bf16 %v1779, %v1778
      %v1958 = vpack.c.bf16 %v1781, %v1780
      %v1959 = vpack.c.bf16 %v1783, %v1782
      %v1960 = vpack.c.bf16 %v1785, %v1784
      %v1961 = vpack.c.bf16 %v1787, %v1786
      %v1962 = vpack.c.bf16 %v1789, %v1788
      %v1963 = vpack.c.bf16 %v1791, %v1790
      %v1964 = vpack.c.bf16 %v1793, %v1792
      %v1965 = vpack.c.bf16 %v1795, %v1794
      %v1966 = vpack.c.bf16 %v1797, %v1796
      %v1967 = vpack.c.bf16 %v1799, %v1798
      %v1968 = vpack.c.bf16 %v1801, %v1800
      %v1969 = vpack.c.bf16 %v1803, %v1802
      %v1970 = vpack.c.bf16 %v1805, %v1804
      %v1971 = vpack.c.bf16 %v1807, %v1806
      %v1972 = vpack.c.bf16 %v1809, %v1808
      %v1973 = vpack.c.bf16 %v1811, %v1810
      %v1974 = vpack.c.bf16 %v1813, %v1812
      %v1975 = vpack.c.bf16 %v1815, %v1814
      %v1976 = vpack.c.bf16 %v1817, %v1816
      %v1977 = vpack.c.bf16 %v1819, %v1818
      %v1978 = vpack.c.bf16 %v1821, %v1820
      %v1979 = vpack.c.bf16 %v1823, %v1822
      %v1980 = vpack.c.bf16 %v1825, %v1824
      %v1981 = vpack.c.bf16 %v1827, %v1826
      %v1982 = vpack.c.bf16 %v1829, %v1828
      %v1983 = vpack.c.bf16 %v1831, %v1830
      %v1984 = vpack.c.bf16 %v1833, %v1832
      %v1985 = vpack.c.bf16 %v1835, %v1834
      %v1986 = vpack.c.bf16 %v1837, %v1836
      %v1987 = vpack.c.bf16 %v1839, %v1838
      %v1988 = vpack.c.bf16 %v1841, %v1840
      %v1989 = vpack.c.bf16 %v1843, %v1842
      %v1990 = vpack.c.bf16 %v1845, %v1844
      %v1991 = vpack.c.bf16 %v1847, %v1846
      %v1992 = vpack.c.bf16 %v1849, %v1848
      %v1993 = vpack.c.bf16 %v1851, %v1850
      %v1994 = vpack.c.bf16 %v1853, %v1852
      %v1995 = vpack.c.bf16 %v1855, %v1854
      %v1996 = vpack.c.bf16 %v1857, %v1856
      %v1997 = vpack.c.bf16 %v1859, %v1858
      %v1998 = vpack.c.bf16 %v1861, %v1860
      %v1999 = vpack.c.bf16 %v1863, %v1862
      %v2000 = vpack.c.bf16 %v1865, %v1864
      %v2001 = vpack.c.bf16 %v1867, %v1866
      %2002 = vmatprep.subr.bf16.mxu0 0
      %2003 = vmatpush1.bf16.msra.mxu0 %v1938
      %2004 = vmatprep.subr.bf16.mxu0 0
      %2005 = vmatpush1.bf16.msra.mxu0 %v1939
      %2006 = vmatprep.subr.bf16.mxu0 0
      %2007 = vmatpush1.bf16.msra.mxu0 %v1940
      %2008 = vmatprep.subr.bf16.mxu0 0
      %2009 = vmatpush1.bf16.msra.mxu0 %v1941
      %2010 = vmatprep.subr.bf16.mxu0 0
      %2011 = vmatpush1.bf16.msra.mxu0 %v1942
      %2012 = vmatprep.subr.bf16.mxu0 0
      %2013 = vmatpush1.bf16.msra.mxu0 %v1943
      %2014 = vmatprep.subr.bf16.mxu0 0
      %2015 = vmatpush1.bf16.msra.mxu0 %v1944
      %2016 = vmatprep.subr.bf16.mxu0 0
      %2017 = vmatpush1.bf16.msra.mxu0 %v1945
      %2018 = vmatprep.subr.bf16.mxu0 0
      %2019 = vmatpush1.bf16.msra.mxu0 %v1946
      %2020 = vmatprep.subr.bf16.mxu0 0
      %2021 = vmatpush1.bf16.msra.mxu0 %v1947
      %2022 = vmatprep.subr.bf16.mxu0 0
      %2023 = vmatpush1.bf16.msra.mxu0 %v1948
      %2024 = vmatprep.subr.bf16.mxu0 0
      %2025 = vmatpush1.bf16.msra.mxu0 %v1949
      %2026 = vmatprep.subr.bf16.mxu0 0
      %2027 = vmatpush1.bf16.msra.mxu0 %v1950
      %2028 = vmatprep.subr.bf16.mxu0 0
      %2029 = vmatpush1.bf16.msra.mxu0 %v1951
      %2030 = vmatprep.subr.bf16.mxu0 0
      %2031 = vmatpush1.bf16.msra.mxu0 %v1952
      %2032 = vmatprep.subr.bf16.mxu0 0
      %2033 = vmatpush1.bf16.msra.mxu0 %v1953
      %2034 = vmatprep.mubr.bf16.mxu0 %v1930
      %2035 = vmatmul.mubr.bf16.gmra.mrb[0].mxu0 %v1929
      %v2036 = vpop.f32.mrb[0].mxu0
      %v2037 = vadd.f32 0.0, %v2036
      %v2038 = vpop.f32.mrb[0].mxu0
      %v2039 = vpop.f32.mrb[0].mxu0
      %v2040 = vpop.f32.mrb[0].mxu0
      %2041 = vdwg.mxu0
      %2042 = vmatprep.subr.bf16.mxu0 0
      %2043 = vmatpush1.bf16.msra.mxu0 %v1954
      %2044 = vmatprep.subr.bf16.mxu0 0
      %2045 = vmatpush1.bf16.msra.mxu0 %v1955
      %2046 = vmatprep.subr.bf16.mxu0 0
      %2047 = vmatpush1.bf16.msra.mxu0 %v1956
      %2048 = vmatprep.subr.bf16.mxu0 0
      %2049 = vmatpush1.bf16.msra.mxu0 %v1957
      %2050 = vmatprep.subr.bf16.mxu0 0
      %2051 = vmatpush1.bf16.msra.mxu0 %v1958
      %2052 = vmatprep.subr.bf16.mxu0 0
      %2053 = vmatpush1.bf16.msra.mxu0 %v1959
      %2054 = vmatprep.subr.bf16.mxu0 0
      %2055 = vmatpush1.bf16.msra.mxu0 %v1960
      %2056 = vmatprep.subr.bf16.mxu0 0
      %2057 = vmatpush1.bf16.msra.mxu0 %v1961
      %2058 = vmatprep.subr.bf16.mxu0 0
      %2059 = vmatpush1.bf16.msra.mxu0 %v1962
      %2060 = vmatprep.subr.bf16.mxu0 0
      %2061 = vmatpush1.bf16.msra.mxu0 %v1963
      %2062 = vmatprep.subr.bf16.mxu0 0
      %2063 = vmatpush1.bf16.msra.mxu0 %v1964
      %2064 = vmatprep.subr.bf16.mxu0 0
      %2065 = vmatpush1.bf16.msra.mxu0 %v1965
      %2066 = vmatprep.subr.bf16.mxu0 0
      %2067 = vmatpush1.bf16.msra.mxu0 %v1966
      %2068 = vmatprep.subr.bf16.mxu0 0
      %2069 = vmatpush1.bf16.msra.mxu0 %v1967
      %2070 = vmatprep.subr.bf16.mxu0 0
      %2071 = vmatpush1.bf16.msra.mxu0 %v1968
      %2072 = vmatprep.subr.bf16.mxu0 0
      %2073 = vmatpush1.bf16.msra.mxu0 %v1969
      %2074 = vmatprep.mubr.bf16.mxu0 %v1932
      %2075 = vmatmul.mubr.bf16.gmra.mrb[0].mxu0 %v1931
      %v2076 = vpop.f32.mrb[0].mxu0
      %v2077 = vadd.f32 %v2037, %v2076
      %v2078 = vpop.f32.mrb[0].mxu0
      %v2079 = vpop.f32.mrb[0].mxu0
      %v2080 = vpop.f32.mrb[0].mxu0
      %2081 = vdwg.mxu0
      %2082 = vmatprep.subr.bf16.mxu0 0
      %2083 = vmatpush1.bf16.msra.mxu0 %v1970
      %2084 = vmatprep.subr.bf16.mxu0 0
      %2085 = vmatpush1.bf16.msra.mxu0 %v1971
      %2086 = vmatprep.subr.bf16.mxu0 0
      %2087 = vmatpush1.bf16.msra.mxu0 %v1972
      %2088 = vmatprep.subr.bf16.mxu0 0
      %2089 = vmatpush1.bf16.msra.mxu0 %v1973
      %2090 = vmatprep.subr.bf16.mxu0 0
      %2091 = vmatpush1.bf16.msra.mxu0 %v1974
      %2092 = vmatprep.subr.bf16.mxu0 0
      %2093 = vmatpush1.bf16.msra.mxu0 %v1975
      %2094 = vmatprep.subr.bf16.mxu0 0
      %2095 = vmatpush1.bf16.msra.mxu0 %v1976
      %2096 = vmatprep.subr.bf16.mxu0 0
      %2097 = vmatpush1.bf16.msra.mxu0 %v1977
      %2098 = vmatprep.subr.bf16.mxu0 0
      %2099 = vmatpush1.bf16.msra.mxu0 %v1978
      %2100 = vmatprep.subr.bf16.mxu0 0
      %2101 = vmatpush1.bf16.msra.mxu0 %v1979
      %2102 = vmatprep.subr.bf16.mxu0 0
      %2103 = vmatpush1.bf16.msra.mxu0 %v1980
      %2104 = vmatprep.subr.bf16.mxu0 0
      %2105 = vmatpush1.bf16.msra.mxu0 %v1981
      %2106 = vmatprep.subr.bf16.mxu0 0
      %2107 = vmatpush1.bf16.msra.mxu0 %v1982
      %2108 = vmatprep.subr.bf16.mxu0 0
      %2109 = vmatpush1.bf16.msra.mxu0 %v1983
      %2110 = vmatprep.subr.bf16.mxu0 0
      %2111 = vmatpush1.bf16.msra.mxu0 %v1984
      %2112 = vmatprep.subr.bf16.mxu0 0
      %2113 = vmatpush1.bf16.msra.mxu0 %v1985
      %2114 = vmatprep.mubr.bf16.mxu0 %v1934
      %2115 = vmatmul.mubr.bf16.gmra.mrb[0].mxu0 %v1933
      %v2116 = vpop.f32.mrb[0].mxu0
      %v2117 = vadd.f32 %v2077, %v2116
      %v2118 = vpop.f32.mrb[0].mxu0
      %v2119 = vpop.f32.mrb[0].mxu0
      %v2120 = vpop.f32.mrb[0].mxu0
      %2121 = vdwg.mxu0
      %2122 = vmatprep.subr.bf16.mxu0 0
      %2123 = vmatpush1.bf16.msra.mxu0 %v1986
      %2124 = vmatprep.subr.bf16.mxu0 0
      %2125 = vmatpush1.bf16.msra.mxu0 %v1987
      %2126 = vmatprep.subr.bf16.mxu0 0
      %2127 = vmatpush1.bf16.msra.mxu0 %v1988
      %2128 = vmatprep.subr.bf16.mxu0 0
      %2129 = vmatpush1.bf16.msra.mxu0 %v1989
      %2130 = vmatprep.subr.bf16.mxu0 0
      %2131 = vmatpush1.bf16.msra.mxu0 %v1990
      %2132 = vmatprep.subr.bf16.mxu0 0
      %2133 = vmatpush1.bf16.msra.mxu0 %v1991
      %2134 = vmatprep.subr.bf16.mxu0 0
      %2135 = vmatpush1.bf16.msra.mxu0 %v1992
      %2136 = vmatprep.subr.bf16.mxu0 0
      %2137 = vmatpush1.bf16.msra.mxu0 %v1993
      %2138 = vmatprep.subr.bf16.mxu0 0
      %2139 = vmatpush1.bf16.msra.mxu0 %v1994
      %2140 = vmatprep.subr.bf16.mxu0 0
      %2141 = vmatpush1.bf16.msra.mxu0 %v1995
      %2142 = vmatprep.subr.bf16.mxu0 0
      %2143 = vmatpush1.bf16.msra.mxu0 %v1996
      %2144 = vmatprep.subr.bf16.mxu0 0
      %2145 = vmatpush1.bf16.msra.mxu0 %v1997
      %2146 = vmatprep.subr.bf16.mxu0 0
      %2147 = vmatpush1.bf16.msra.mxu0 %v1998
      %2148 = vmatprep.subr.bf16.mxu0 0
      %2149 = vmatpush1.bf16.msra.mxu0 %v1999
      %2150 = vmatprep.subr.bf16.mxu0 0
      %2151 = vmatpush1.bf16.msra.mxu0 %v2000
      %2152 = vmatprep.subr.bf16.mxu0 0
      %2153 = vmatpush1.bf16.msra.mxu0 %v2001
      %2154 = vmatprep.mubr.bf16.mxu0 %v1936
      %2155 = vmatmul.mubr.bf16.gmra.mrb[0].mxu0 %v1935
      %v2156 = vpop.f32.mrb[0].mxu0
      %v2157 = vadd.f32 %v2117, %v2156
      %v2158 = vpop.f32.mrb[0].mxu0
      %v2159 = vpop.f32.mrb[0].mxu0
      %v2160 = vpop.f32.mrb[0].mxu0
      %2161 = vdwg.mxu0
      %v2162 = vadd.f32 %v1937, %v2157
      %vm2163 = vcmask 265216
      %2164 = vst.msk [vmem:[%s269] sm:$0xf] %vm2163, %v2162
      %p2165 = scmp.lt.s32.totalorder %s20, 1
      %s2166 = scalar_select %p2165, %s20, 1
      %s2167 = smul.addr %s2166, 4
      %s2168 = scalar_lea.vmem %s5, %s2167
      // Predicated region
      $region45: #{attentive_fp_post_forward.2} parent=39 // pred_check
        %p2169 = pneg %p165
      $region46: #{attentive_fp_post_forward.2} parent=39 // pred_check_branch
        %2171 = sbr.rel (%p2169) target = $region48
      $region47: #{attentive_fp_post_forward.2} parent=39 // pred_region
        _
      $region48: #{attentive_fp_post_forward.2} parent=39 // pred_fallthru
        _
    $region40: #{attentive_fp_post_forward.2} parent=5 // pred_fallthru
      _
    %p2172 = scmp.le.s32.totalorder 2, %s11
    // Predicated region
    $region49: #{attentive_fp_post_forward.2} parent=5 // pred_check
      %p2173 = pneg %p2172
    $region50: #{attentive_fp_post_forward.2} parent=5 // pred_check_branch
      %2175 = sbr.rel (%p2173) target = $region52
    $region51: #{attentive_fp_post_forward.2} parent=5 // pred_region
      %s2176 = ssub.s32 %s11, 2
      // Predicated region
      $region53: #{attentive_fp_post_forward.2} parent=51 // pred_check
        %p2177 = pneg %p171
      $region54: #{attentive_fp_post_forward.2} parent=51 // pred_check_branch
        %2179 = sbr.rel (%p2177) target = $region56
      $region55: #{attentive_fp_post_forward.2} parent=51 // pred_region
        %p2180 = scmp.lt.s32.totalorder %s22, 1
        %s2181 = scalar_select %p2180, %s22, 1
        %s2182 = smul.addr %s2181, 4
        %s2183 = scalar_lea.vmem %s5, %s2182
      $region56: #{attentive_fp_post_forward.2} parent=51 // pred_fallthru
        _
    $region52: #{attentive_fp_post_forward.2} parent=5 // pred_fallthru
      _
  $region6: #{attentive_fp_post_forward.2} parent=0 // loop_footer
    %s15 = sadd.s32 1, %s11
  $region7: #{attentive_fp_post_forward.2} parent=0 // loop_footer_branch
    %10 = sbr.rel target = $region3
  $region8: #{attentive_fp_post_forward.2} parent=0 // loop_exit
    _

</llo_original>
